<compile_context>
chip_gen: v7x
topology: tpu7x:2x2x1
jax: 0.10.0
libtpu: 0.0.40
codegen_flags: <defaults>
</compile_context>

<pallas_src>
import jax
import jax.numpy as jnp
from jax.experimental import pallas as pl
from jax.experimental.pallas import tpu as pltpu


# ----------------------------------------------------------------------------
# In-kernel building blocks (activations as (C, N): channels on sublanes,
# spatial positions on the lane axis).
# ----------------------------------------------------------------------------
def _head(kind, v):
    """softmax / log_softmax / identity over the channel axis (axis 0)."""
    if kind == "logits":
        return v
    m = jnp.max(v, axis=0, keepdims=True)
    s = v - m
    if kind == "softmax":
        e = jnp.exp(s)
        return e / jnp.sum(e, axis=0, keepdims=True)
    if kind == "logsoftmax":
        return s - jnp.log(jnp.sum(jnp.exp(s), axis=0, keepdims=True))
    raise ValueError(kind)


def _shift_l(x, s, lidx, L):
    """Shift x (C, N), N = W*L laid out W-major, by s along L with zero padding
    at each per-W-column boundary.  lidx = hoisted (1, N) 'index within L'."""
    C, N = x.shape
    d = abs(s)
    zeros = jnp.zeros((C, d), jnp.float32)
    if s < 0:                                  # source l + s, s = -dilation
        xt = jnp.concatenate([zeros, x[:, :N - d]], axis=1)
        mask = lidx >= d                       # l + s >= 0
    else:                                      # s = +dilation
        xt = jnp.concatenate([x[:, d:], zeros], axis=1)
        mask = lidx < L - d                    # l + s < L
    return jnp.where(mask, xt, 0.0)


def _dilated_residual(w_ref, lm, x, *, F, K, lidx, L):
    """One DilatedResidualLayer: dilated (K,1) conv + ReLU + 1x1 conv + add."""
    d = lm["d"]
    h = None
    for t in range(K):
        s = t * d - d                          # padding = (dilation, 0)
        if s != 0 and abs(s) >= L:
            continue                           # tap entirely outside sequence
        xt = x if s == 0 else _shift_l(x, s, lidx, L)
        w1t = w_ref[lm["w1"] + t * F: lm["w1"] + (t + 1) * F, 0:F]   # (out,in)
        part = jnp.dot(w1t, xt, preferred_element_type=jnp.float32)
        h = part if h is None else h + part
    b1 = w_ref[lm["b1"]: lm["b1"] + F, 0:1]
    h = jnp.maximum(h + b1, 0.0)               # bias + ReLU
    w2 = w_ref[lm["w2"]: lm["w2"] + F, 0:F]
    b2 = w_ref[lm["b2"]: lm["b2"] + F, 0:1]
    y = jnp.dot(w2, h, preferred_element_type=jnp.float32) + b2
    return x + y                               # dropout == identity (eval)


def _run_stage(w_ref, sm, x, lidx, L):
    F, Cin, NC, K = sm["F"], sm["Cin"], sm["NC"], sm["K"]
    w = w_ref[sm["cin_w"]: sm["cin_w"] + F, 0:Cin]
    b = w_ref[sm["cin_b"]: sm["cin_b"] + F, 0:1]
    h = jnp.dot(w, x, preferred_element_type=jnp.float32) + b
    for lm in sm["layers"]:                    # static loop over layers
        h = _dilated_residual(w_ref, lm, h, F=F, K=K, lidx=lidx, L=L)
    wo = w_ref[sm["cout_w"]: sm["cout_w"] + NC, 0:F]
    bo = w_ref[sm["cout_b"]: sm["cout_b"] + NC, 0:1]
    return jnp.dot(wo, h, preferred_element_type=jnp.float32) + bo


def _make_fused_kernel(meta, refine, output_type, W, L):
    """meta: per-stage dict of static sizes / slab row offsets / dilations."""

    def kernel(x_ref, w_ref, out_ref):
        # Hoisted "index within L" iotas — reused by every tap of every layer.
        l_wl = jax.lax.broadcasted_iota(jnp.int32, (1, W * L), 1) % L
        l_l = jax.lax.broadcasted_iota(jnp.int32, (1, L), 1)
        x = x_ref[...]                          # (Cin, W*L) in VMEM
        for si, sm in enumerate(meta):
            if si > 0:
                x = _head(refine, x)            # inter-stage probability
            y = _run_stage(w_ref, sm, x, l_wl if si == 0 else l_l, L)
            if si == 0:
                # avg_pool2d over W: mean over the W contiguous L-blocks.
                acc = y[:, 0:L]
                for wb in range(1, W):
                    acc = acc + y[:, wb * L:(wb + 1) * L]
                y = acc * (1.0 / W)             # (NC, L)
            out_ref[si] = _head(output_type, y)  # lane-dense (NC, L) store
            x = y                                # raw stage output feeds on

    return kernel


# ----------------------------------------------------------------------------
# Wrapper: pack all weights into one slab, call the single fused pallas_call
# ----------------------------------------------------------------------------
def model_forward(params, x_nchw, *, refine="softmax", output_type="logits"):
    """x_nchw: (1, C_in, L, W) float32 -> (stages, 1, num_classes, L)."""
    assert x_nchw.shape[0] == 1
    C_in, L, W = int(x_nchw.shape[1]), int(x_nchw.shape[2]), int(x_nchw.shape[3])
    # (C, L, W) -> (C, W, L) -> (C, W*L): W-major so L is lane-contiguous.
    x = jnp.transpose(x_nchw[0].astype(jnp.float32), (0, 2, 1)).reshape(C_in, W * L)

    stages_p = params["stages"]

    # Column width of the weight slab = max "in" dimension over all matrices.
    cmax = 1
    for sp in stages_p:
        cmax = max(cmax, int(sp["conv_in_w"].shape[0]),
                   int(sp["conv_in_w"].shape[1]), int(sp["conv_out_w"].shape[0]))

    blocks = []
    meta = []
    row = 0

    def put(mat):
        nonlocal row
        r0 = row
        r, c = mat.shape
        blocks.append(jnp.pad(mat.astype(jnp.float32), ((0, 0), (0, cmax - c))))
        row += r
        return r0

    for sp in stages_p:
        F = int(sp["conv_in_w"].shape[1])
        Cin = int(sp["conv_in_w"].shape[0])
        NC = int(sp["conv_out_w"].shape[1])
        layers = sp["layers"]
        K = int(layers[0]["ksize"])
        # padding=(dilation, 0) is length-preserving only for kernel == 3.
        assert K == 3, "MS-TCN residual layer requires kernel size 3"
        sm = {"F": F, "Cin": Cin, "NC": NC, "K": K}
        sm["cin_w"] = put(jnp.transpose(sp["conv_in_w"]))            # (F, Cin)
        sm["cin_b"] = put(jnp.reshape(sp["conv_in_b"], (F, 1)))
        sm["layers"] = []
        for l in layers:
            lm = {"d": int(l["dilation"])}
            lm["w1"] = put(jnp.concatenate(                          # (K*F, F)
                [jnp.transpose(l["w1"][t]) for t in range(K)], axis=0))
            lm["b1"] = put(jnp.reshape(l["b1"], (F, 1)))
            lm["w2"] = put(jnp.transpose(l["w2"]))                   # (F, F)
            lm["b2"] = put(jnp.reshape(l["b2"], (F, 1)))
            sm["layers"].append(lm)
        sm["cout_w"] = put(jnp.transpose(sp["conv_out_w"]))          # (NC, F)
        sm["cout_b"] = put(jnp.reshape(sp["conv_out_b"], (NC, 1)))
        meta.append(sm)

    wslab = jnp.concatenate(blocks, axis=0)      # one (R_total, cmax) f32 slab

    n_stages = len(stages_p)
    num_classes = meta[0]["NC"]
    kern = _make_fused_kernel(meta, refine, output_type, W, L)

    out = pl.pallas_call(
        kern,
        out_shape=jax.ShapeDtypeStruct((n_stages, num_classes, L), jnp.float32),
        in_specs=[pl.BlockSpec(memory_space=pltpu.MemorySpace.VMEM),
                  pl.BlockSpec(memory_space=pltpu.MemorySpace.VMEM)],
        out_specs=pl.BlockSpec(memory_space=pltpu.MemorySpace.VMEM),
    )(x, wslab)
    return out[:, None, :, :]                    # (stages, 1, NC, L)


# ----------------------------------------------------------------------------
# Pure-JAX reference (lax.conv) for validation
# ----------------------------------------------------------------------------
def _ref_pw(x, w, b):
    k = jnp.transpose(w, (1, 0))[:, :, None, None]
    y = jax.lax.conv_general_dilated(x, k, (1, 1), [(0, 0), (0, 0)],
                                     dimension_numbers=("NCHW", "OIHW", "NCHW"))
    return y + b.reshape(1, -1, 1, 1)


def _ref_dilated(x, w1, b1, w2, b2, d):
    k1 = jnp.transpose(w1, (2, 1, 0))[:, :, :, None]   # (Cout, Cin, K, 1)
    y = jax.lax.conv_general_dilated(x, k1, (1, 1), [(d, d), (0, 0)],
                                     rhs_dilation=(d, 1),
                                     dimension_numbers=("NCHW", "OIHW", "NCHW"))
    y = jnp.maximum(y + b1.reshape(1, -1, 1, 1), 0.0)
    return x + _ref_pw(y, w2, b2)


def _ref_stage(p, x):
    x = _ref_pw(x, p["conv_in_w"], p["conv_in_b"])
    for l in p["layers"]:
        x = _ref_dilated(x, l["w1"], l["b1"], l["w2"], l["b2"], l["dilation"])
    return _ref_pw(x, p["conv_out_w"], p["conv_out_b"])


def model_forward_ref(params, x, *, refine="softmax", output_type="logits"):
    prob = {"logits": lambda v: v,
            "logsoftmax": lambda v: jax.nn.log_softmax(v, axis=1),
            "softmax": lambda v: jax.nn.softmax(v, axis=1)}[refine]
    outf = {"logits": lambda v: v,
            "logsoftmax": lambda v: jax.nn.log_softmax(v, axis=1),
            "softmax": lambda v: jax.nn.softmax(v, axis=1)}[output_type]
    outs = []
    x = _ref_stage(params["stages"][0], x)
    x = jnp.mean(x, axis=-1, keepdims=True)
    outs.append(outf(x[..., 0]))
    for sp in params["stages"][1:]:
        x = _ref_stage(sp, prob(x))
        outs.append(outf(x[..., 0]))
    return jnp.stack(outs, axis=0)


# ----------------------------------------------------------------------------
# Deterministic parameter init
# ----------------------------------------------------------------------------
def init_stage(key, in_ch, out_ch, filters, num_layers, ksize):
    keys = jax.random.split(key, 4 + 4 * num_layers)
    s = 0.1
    p = {
        "conv_in_w": s * jax.random.normal(keys[0], (in_ch, filters), jnp.float32),
        "conv_in_b": s * jax.random.normal(keys[1], (1, filters), jnp.float32),
        "conv_out_w": s * jax.random.normal(keys[2], (filters, out_ch), jnp.float32),
        "conv_out_b": s * jax.random.normal(keys[3], (1, out_ch), jnp.float32),
        "layers": [],
    }
    for i in range(num_layers):
        k0, k1, k2, k3 = keys[4 + 4 * i: 8 + 4 * i]
        p["layers"].append({
            "w1": s * jax.random.normal(k0, (ksize, filters, filters), jnp.float32),
            "b1": s * jax.random.normal(k1, (1, filters), jnp.float32),
            "w2": s * jax.random.normal(k2, (filters, filters), jnp.float32),
            "b2": s * jax.random.normal(k3, (1, filters), jnp.float32),
            "dilation": 2 ** i,
            "ksize": ksize,
        })
    return p


def init_model(key, *, in_feat, num_classes, filters, layers, kernel):
    stages = len(filters)
    keys = jax.random.split(key, stages)
    ps = [init_stage(keys[0], in_feat, num_classes, filters[0], layers[0], kernel[0])]
    for i in range(1, stages):
        ps.append(init_stage(keys[i], num_classes, num_classes,
                             filters[i], layers[i], kernel[i]))
    return {"stages": ps}


# ----------------------------------------------------------------------------
if __name__ == "__main__":
    # config: ms-tcn with 2 stages, in_feat=8, num_classes=4, filters=[8,8],
    # layers=[3,2], kernel=[3,3], dropout=[0,0]; refine='softmax',
    # output_type='logits'. Input NCHW = (1, 8, 16, 4).
    key = jax.random.PRNGKey(0)
    k_x, k_p = jax.random.split(key)

    params = init_model(k_p, in_feat=8, num_classes=4,
                        filters=[8, 8], layers=[3, 2], kernel=[3, 3])
    x = jax.random.normal(k_x, (1, 8, 16, 4), jnp.float32)

    out = model_forward(params, x, refine="softmax", output_type="logits")
    out = jax.block_until_ready(out)

    ref = jax.block_until_ready(
        model_forward_ref(params, x, refine="softmax", output_type="logits"))

    assert out.shape == (2, 1, 4, 16), out.shape
    assert bool(jnp.all(jnp.isfinite(out)))
    assert bool(jnp.allclose(out, ref, atol=1e-4, rtol=1e-4)), \
        float(jnp.max(jnp.abs(out - ref)))
    print("KERNEL_OK")
</pallas_src>

<mosaic_0001>
module attributes {stable_mosaic.version = 11 : i64} {
  func.func @kernel(%arg0: memref<8x64xf32, #tpu.memory_space<vmem>>, %arg1: memref<288x8xf32, #tpu.memory_space<vmem>>, %arg2: memref<2x4x16xf32, #tpu.memory_space<vmem>>) attributes {dimension_semantics = [], scalar_prefetch = 0 : i64, scratch_operands = 0 : i64, tpu.core_type = #tpu.core_type<tc>} {
    %0 = tpu.iota {dimensions = array<i32: 1>} : vector<1x64xi32>
    %c16_i32 = arith.constant 16 : i32
    %c0_i32 = arith.constant 0 : i32
    %1 = arith.cmpi eq, %c16_i32, %c0_i32 : i32
    %c1_i32 = arith.constant 1 : i32
    %2 = arith.select %1, %c1_i32, %c16_i32 : i32
    %3 = vector.broadcast %2 : i32 to vector<1x64xi32>
    %4 = arith.remsi %0, %3 : vector<1x64xi32>
    %c0_i32_0 = arith.constant 0 : i32
    %5 = vector.broadcast %c0_i32_0 : i32 to vector<1x64xi32>
    %6 = arith.cmpi ne, %4, %5 : vector<1x64xi32>
    %c0_i32_1 = arith.constant 0 : i32
    %7 = vector.broadcast %c0_i32_1 : i32 to vector<1x64xi32>
    %8 = arith.cmpi slt, %4, %7 : vector<1x64xi32>
    %c0_i32_2 = arith.constant 0 : i32
    %9 = arith.cmpi slt, %2, %c0_i32_2 : i32
    %10 = vector.broadcast %9 : i1 to vector<1x64xi1>
    %11 = vector.broadcast %10 : vector<1x64xi1> to vector<1x64xi1>
    %12 = arith.xori %8, %11 : vector<1x64xi1>
    %13 = arith.andi %12, %6 : vector<1x64xi1>
    %14 = vector.broadcast %2 : i32 to vector<1x64xi32>
    %15 = arith.addi %4, %14 : vector<1x64xi32>
    %16 = arith.select %13, %15, %4 : vector<1x64xi1>, vector<1x64xi32>
    %17 = tpu.iota {dimensions = array<i32: 1>} : vector<1x16xi32>
    %c0 = arith.constant 0 : index
    %c0_3 = arith.constant 0 : index
    %18 = vector.load %arg0[%c0, %c0_3] : memref<8x64xf32, #tpu.memory_space<vmem>>, vector<8x64xf32>
    %c0_4 = arith.constant 0 : index
    %c0_5 = arith.constant 0 : index
    %19 = vector.load %arg1[%c0_4, %c0_5] : memref<288x8xf32, #tpu.memory_space<vmem>>, vector<8x8xf32>
    %c8 = arith.constant 8 : index
    %c0_6 = arith.constant 0 : index
    %20 = vector.load %arg1[%c8, %c0_6] : memref<288x8xf32, #tpu.memory_space<vmem>>, vector<8x1xf32>
    %cst = arith.constant dense<0.000000e+00> : vector<8x64xf32>
    %21 = tpu.matmul %19, %18, %cst {dimension_numbers = #tpu.dot_dimension_numbers<[1], [0], [0], [1], [0, 0, 1, 1], [], []>} : vector<8x8xf32>, vector<8x64xf32>, vector<8x64xf32> -> vector<8x64xf32>
    %22 = vector.broadcast %20 : vector<8x1xf32> to vector<8x64xf32>
    %23 = arith.addf %21, %22 : vector<8x64xf32>
    %cst_7 = arith.constant 0.000000e+00 : f32
    %24 = vector.broadcast %cst_7 : f32 to vector<8x1xf32>
    %25 = vector.extract_strided_slice %23 {offsets = [0, 0], sizes = [8, 63], strides = [1, 1]} : vector<8x64xf32> to vector<8x63xf32>
    %26 = tpu.concatenate %24, %25 in 1 : vector<8x1xf32>, vector<8x63xf32> -> vector<8x64xf32>
    %c1_i32_8 = arith.constant 1 : i32
    %27 = vector.broadcast %c1_i32_8 : i32 to vector<1x64xi32>
    %28 = arith.cmpi sge, %16, %27 : vector<1x64xi32>
    %cst_9 = arith.constant 0.000000e+00 : f32
    %29 = vector.shape_cast %28 : vector<1x64xi1> to vector<1x64xi1>
    %30 = vector.broadcast %29 : vector<1x64xi1> to vector<8x64xi1>
    %31 = vector.broadcast %cst_9 : f32 to vector<8x64xf32>
    %32 = arith.select %30, %26, %31 : vector<8x64xi1>, vector<8x64xf32>
    %c16 = arith.constant 16 : index
    %c0_10 = arith.constant 0 : index
    %33 = vector.load %arg1[%c16, %c0_10] : memref<288x8xf32, #tpu.memory_space<vmem>>, vector<8x8xf32>
    %cst_11 = arith.constant dense<0.000000e+00> : vector<8x64xf32>
    %34 = tpu.matmul %33, %32, %cst_11 {dimension_numbers = #tpu.dot_dimension_numbers<[1], [0], [0], [1], [0, 0, 1, 1], [], []>} : vector<8x8xf32>, vector<8x64xf32>, vector<8x64xf32> -> vector<8x64xf32>
    %c24 = arith.constant 24 : index
    %c0_12 = arith.constant 0 : index
    %35 = vector.load %arg1[%c24, %c0_12] : memref<288x8xf32, #tpu.memory_space<vmem>>, vector<8x8xf32>
    %cst_13 = arith.constant dense<0.000000e+00> : vector<8x64xf32>
    %36 = tpu.matmul %35, %23, %cst_13 {dimension_numbers = #tpu.dot_dimension_numbers<[1], [0], [0], [1], [0, 0, 1, 1], [], []>} : vector<8x8xf32>, vector<8x64xf32>, vector<8x64xf32> -> vector<8x64xf32>
    %37 = arith.addf %34, %36 : vector<8x64xf32>
    %cst_14 = arith.constant 0.000000e+00 : f32
    %38 = vector.broadcast %cst_14 : f32 to vector<8x1xf32>
    %39 = vector.extract_strided_slice %23 {offsets = [0, 1], sizes = [8, 63], strides = [1, 1]} : vector<8x64xf32> to vector<8x63xf32>
    %40 = tpu.concatenate %39, %38 in 1 : vector<8x63xf32>, vector<8x1xf32> -> vector<8x64xf32>
    %c15_i32 = arith.constant 15 : i32
    %41 = vector.broadcast %c15_i32 : i32 to vector<1x64xi32>
    %42 = arith.cmpi slt, %16, %41 : vector<1x64xi32>
    %cst_15 = arith.constant 0.000000e+00 : f32
    %43 = vector.shape_cast %42 : vector<1x64xi1> to vector<1x64xi1>
    %44 = vector.broadcast %43 : vector<1x64xi1> to vector<8x64xi1>
    %45 = vector.broadcast %cst_15 : f32 to vector<8x64xf32>
    %46 = arith.select %44, %40, %45 : vector<8x64xi1>, vector<8x64xf32>
    %c32 = arith.constant 32 : index
    %c0_16 = arith.constant 0 : index
    %47 = vector.load %arg1[%c32, %c0_16] : memref<288x8xf32, #tpu.memory_space<vmem>>, vector<8x8xf32>
    %cst_17 = arith.constant dense<0.000000e+00> : vector<8x64xf32>
    %48 = tpu.matmul %47, %46, %cst_17 {dimension_numbers = #tpu.dot_dimension_numbers<[1], [0], [0], [1], [0, 0, 1, 1], [], []>} : vector<8x8xf32>, vector<8x64xf32>, vector<8x64xf32> -> vector<8x64xf32>
    %49 = arith.addf %37, %48 : vector<8x64xf32>
    %c40 = arith.constant 40 : index
    %c0_18 = arith.constant 0 : index
    %50 = vector.load %arg1[%c40, %c0_18] : memref<288x8xf32, #tpu.memory_space<vmem>>, vector<8x1xf32>
    %51 = vector.broadcast %50 : vector<8x1xf32> to vector<8x64xf32>
    %52 = arith.addf %49, %51 : vector<8x64xf32>
    %cst_19 = arith.constant 0.000000e+00 : f32
    %53 = vector.broadcast %cst_19 : f32 to vector<8x64xf32>
    %54 = arith.maximumf %52, %53 : vector<8x64xf32>
    %c48 = arith.constant 48 : index
    %c0_20 = arith.constant 0 : index
    %55 = vector.load %arg1[%c48, %c0_20] : memref<288x8xf32, #tpu.memory_space<vmem>>, vector<8x8xf32>
    %c56 = arith.constant 56 : index
    %c0_21 = arith.constant 0 : index
    %56 = vector.load %arg1[%c56, %c0_21] : memref<288x8xf32, #tpu.memory_space<vmem>>, vector<8x1xf32>
    %cst_22 = arith.constant dense<0.000000e+00> : vector<8x64xf32>
    %57 = tpu.matmul %55, %54, %cst_22 {dimension_numbers = #tpu.dot_dimension_numbers<[1], [0], [0], [1], [0, 0, 1, 1], [], []>} : vector<8x8xf32>, vector<8x64xf32>, vector<8x64xf32> -> vector<8x64xf32>
    %58 = vector.broadcast %56 : vector<8x1xf32> to vector<8x64xf32>
    %59 = arith.addf %57, %58 : vector<8x64xf32>
    %60 = arith.addf %23, %59 : vector<8x64xf32>
    %cst_23 = arith.constant 0.000000e+00 : f32
    %61 = vector.broadcast %cst_23 : f32 to vector<8x2xf32>
    %62 = vector.extract_strided_slice %60 {offsets = [0, 0], sizes = [8, 62], strides = [1, 1]} : vector<8x64xf32> to vector<8x62xf32>
    %63 = tpu.concatenate %61, %62 in 1 : vector<8x2xf32>, vector<8x62xf32> -> vector<8x64xf32>
    %c2_i32 = arith.constant 2 : i32
    %64 = vector.broadcast %c2_i32 : i32 to vector<1x64xi32>
    %65 = arith.cmpi sge, %16, %64 : vector<1x64xi32>
    %cst_24 = arith.constant 0.000000e+00 : f32
    %66 = vector.shape_cast %65 : vector<1x64xi1> to vector<1x64xi1>
    %67 = vector.broadcast %66 : vector<1x64xi1> to vector<8x64xi1>
    %68 = vector.broadcast %cst_24 : f32 to vector<8x64xf32>
    %69 = arith.select %67, %63, %68 : vector<8x64xi1>, vector<8x64xf32>
    %c64 = arith.constant 64 : index
    %c0_25 = arith.constant 0 : index
    %70 = vector.load %arg1[%c64, %c0_25] : memref<288x8xf32, #tpu.memory_space<vmem>>, vector<8x8xf32>
    %cst_26 = arith.constant dense<0.000000e+00> : vector<8x64xf32>
    %71 = tpu.matmul %70, %69, %cst_26 {dimension_numbers = #tpu.dot_dimension_numbers<[1], [0], [0], [1], [0, 0, 1, 1], [], []>} : vector<8x8xf32>, vector<8x64xf32>, vector<8x64xf32> -> vector<8x64xf32>
    %c72 = arith.constant 72 : index
    %c0_27 = arith.constant 0 : index
    %72 = vector.load %arg1[%c72, %c0_27] : memref<288x8xf32, #tpu.memory_space<vmem>>, vector<8x8xf32>
    %cst_28 = arith.constant dense<0.000000e+00> : vector<8x64xf32>
    %73 = tpu.matmul %72, %60, %cst_28 {dimension_numbers = #tpu.dot_dimension_numbers<[1], [0], [0], [1], [0, 0, 1, 1], [], []>} : vector<8x8xf32>, vector<8x64xf32>, vector<8x64xf32> -> vector<8x64xf32>
    %74 = arith.addf %71, %73 : vector<8x64xf32>
    %cst_29 = arith.constant 0.000000e+00 : f32
    %75 = vector.broadcast %cst_29 : f32 to vector<8x2xf32>
    %76 = vector.extract_strided_slice %60 {offsets = [0, 2], sizes = [8, 62], strides = [1, 1]} : vector<8x64xf32> to vector<8x62xf32>
    %77 = tpu.concatenate %76, %75 in 1 : vector<8x62xf32>, vector<8x2xf32> -> vector<8x64xf32>
    %c14_i32 = arith.constant 14 : i32
    %78 = vector.broadcast %c14_i32 : i32 to vector<1x64xi32>
    %79 = arith.cmpi slt, %16, %78 : vector<1x64xi32>
    %cst_30 = arith.constant 0.000000e+00 : f32
    %80 = vector.shape_cast %79 : vector<1x64xi1> to vector<1x64xi1>
    %81 = vector.broadcast %80 : vector<1x64xi1> to vector<8x64xi1>
    %82 = vector.broadcast %cst_30 : f32 to vector<8x64xf32>
    %83 = arith.select %81, %77, %82 : vector<8x64xi1>, vector<8x64xf32>
    %c80 = arith.constant 80 : index
    %c0_31 = arith.constant 0 : index
    %84 = vector.load %arg1[%c80, %c0_31] : memref<288x8xf32, #tpu.memory_space<vmem>>, vector<8x8xf32>
    %cst_32 = arith.constant dense<0.000000e+00> : vector<8x64xf32>
    %85 = tpu.matmul %84, %83, %cst_32 {dimension_numbers = #tpu.dot_dimension_numbers<[1], [0], [0], [1], [0, 0, 1, 1], [], []>} : vector<8x8xf32>, vector<8x64xf32>, vector<8x64xf32> -> vector<8x64xf32>
    %86 = arith.addf %74, %85 : vector<8x64xf32>
    %c88 = arith.constant 88 : index
    %c0_33 = arith.constant 0 : index
    %87 = vector.load %arg1[%c88, %c0_33] : memref<288x8xf32, #tpu.memory_space<vmem>>, vector<8x1xf32>
    %88 = vector.broadcast %87 : vector<8x1xf32> to vector<8x64xf32>
    %89 = arith.addf %86, %88 : vector<8x64xf32>
    %cst_34 = arith.constant 0.000000e+00 : f32
    %90 = vector.broadcast %cst_34 : f32 to vector<8x64xf32>
    %91 = arith.maximumf %89, %90 : vector<8x64xf32>
    %c96 = arith.constant 96 : index
    %c0_35 = arith.constant 0 : index
    %92 = vector.load %arg1[%c96, %c0_35] : memref<288x8xf32, #tpu.memory_space<vmem>>, vector<8x8xf32>
    %c104 = arith.constant 104 : index
    %c0_36 = arith.constant 0 : index
    %93 = vector.load %arg1[%c104, %c0_36] : memref<288x8xf32, #tpu.memory_space<vmem>>, vector<8x1xf32>
    %cst_37 = arith.constant dense<0.000000e+00> : vector<8x64xf32>
    %94 = tpu.matmul %92, %91, %cst_37 {dimension_numbers = #tpu.dot_dimension_numbers<[1], [0], [0], [1], [0, 0, 1, 1], [], []>} : vector<8x8xf32>, vector<8x64xf32>, vector<8x64xf32> -> vector<8x64xf32>
    %95 = vector.broadcast %93 : vector<8x1xf32> to vector<8x64xf32>
    %96 = arith.addf %94, %95 : vector<8x64xf32>
    %97 = arith.addf %60, %96 : vector<8x64xf32>
    %cst_38 = arith.constant 0.000000e+00 : f32
    %98 = vector.broadcast %cst_38 : f32 to vector<8x4xf32>
    %99 = vector.extract_strided_slice %97 {offsets = [0, 0], sizes = [8, 60], strides = [1, 1]} : vector<8x64xf32> to vector<8x60xf32>
    %100 = tpu.concatenate %98, %99 in 1 : vector<8x4xf32>, vector<8x60xf32> -> vector<8x64xf32>
    %c4_i32 = arith.constant 4 : i32
    %101 = vector.broadcast %c4_i32 : i32 to vector<1x64xi32>
    %102 = arith.cmpi sge, %16, %101 : vector<1x64xi32>
    %cst_39 = arith.constant 0.000000e+00 : f32
    %103 = vector.shape_cast %102 : vector<1x64xi1> to vector<1x64xi1>
    %104 = vector.broadcast %103 : vector<1x64xi1> to vector<8x64xi1>
    %105 = vector.broadcast %cst_39 : f32 to vector<8x64xf32>
    %106 = arith.select %104, %100, %105 : vector<8x64xi1>, vector<8x64xf32>
    %c112 = arith.constant 112 : index
    %c0_40 = arith.constant 0 : index
    %107 = vector.load %arg1[%c112, %c0_40] : memref<288x8xf32, #tpu.memory_space<vmem>>, vector<8x8xf32>
    %cst_41 = arith.constant dense<0.000000e+00> : vector<8x64xf32>
    %108 = tpu.matmul %107, %106, %cst_41 {dimension_numbers = #tpu.dot_dimension_numbers<[1], [0], [0], [1], [0, 0, 1, 1], [], []>} : vector<8x8xf32>, vector<8x64xf32>, vector<8x64xf32> -> vector<8x64xf32>
    %c120 = arith.constant 120 : index
    %c0_42 = arith.constant 0 : index
    %109 = vector.load %arg1[%c120, %c0_42] : memref<288x8xf32, #tpu.memory_space<vmem>>, vector<8x8xf32>
    %cst_43 = arith.constant dense<0.000000e+00> : vector<8x64xf32>
    %110 = tpu.matmul %109, %97, %cst_43 {dimension_numbers = #tpu.dot_dimension_numbers<[1], [0], [0], [1], [0, 0, 1, 1], [], []>} : vector<8x8xf32>, vector<8x64xf32>, vector<8x64xf32> -> vector<8x64xf32>
    %111 = arith.addf %108, %110 : vector<8x64xf32>
    %cst_44 = arith.constant 0.000000e+00 : f32
    %112 = vector.broadcast %cst_44 : f32 to vector<8x4xf32>
    %113 = vector.extract_strided_slice %97 {offsets = [0, 4], sizes = [8, 60], strides = [1, 1]} : vector<8x64xf32> to vector<8x60xf32>
    %114 = tpu.concatenate %113, %112 in 1 : vector<8x60xf32>, vector<8x4xf32> -> vector<8x64xf32>
    %c12_i32 = arith.constant 12 : i32
    %115 = vector.broadcast %c12_i32 : i32 to vector<1x64xi32>
    %116 = arith.cmpi slt, %16, %115 : vector<1x64xi32>
    %cst_45 = arith.constant 0.000000e+00 : f32
    %117 = vector.shape_cast %116 : vector<1x64xi1> to vector<1x64xi1>
    %118 = vector.broadcast %117 : vector<1x64xi1> to vector<8x64xi1>
    %119 = vector.broadcast %cst_45 : f32 to vector<8x64xf32>
    %120 = arith.select %118, %114, %119 : vector<8x64xi1>, vector<8x64xf32>
    %c128 = arith.constant 128 : index
    %c0_46 = arith.constant 0 : index
    %121 = vector.load %arg1[%c128, %c0_46] : memref<288x8xf32, #tpu.memory_space<vmem>>, vector<8x8xf32>
    %cst_47 = arith.constant dense<0.000000e+00> : vector<8x64xf32>
    %122 = tpu.matmul %121, %120, %cst_47 {dimension_numbers = #tpu.dot_dimension_numbers<[1], [0], [0], [1], [0, 0, 1, 1], [], []>} : vector<8x8xf32>, vector<8x64xf32>, vector<8x64xf32> -> vector<8x64xf32>
    %123 = arith.addf %111, %122 : vector<8x64xf32>
    %c136 = arith.constant 136 : index
    %c0_48 = arith.constant 0 : index
    %124 = vector.load %arg1[%c136, %c0_48] : memref<288x8xf32, #tpu.memory_space<vmem>>, vector<8x1xf32>
    %125 = vector.broadcast %124 : vector<8x1xf32> to vector<8x64xf32>
    %126 = arith.addf %123, %125 : vector<8x64xf32>
    %cst_49 = arith.constant 0.000000e+00 : f32
    %127 = vector.broadcast %cst_49 : f32 to vector<8x64xf32>
    %128 = arith.maximumf %126, %127 : vector<8x64xf32>
    %c144 = arith.constant 144 : index
    %c0_50 = arith.constant 0 : index
    %129 = vector.load %arg1[%c144, %c0_50] : memref<288x8xf32, #tpu.memory_space<vmem>>, vector<8x8xf32>
    %c152 = arith.constant 152 : index
    %c0_51 = arith.constant 0 : index
    %130 = vector.load %arg1[%c152, %c0_51] : memref<288x8xf32, #tpu.memory_space<vmem>>, vector<8x1xf32>
    %cst_52 = arith.constant dense<0.000000e+00> : vector<8x64xf32>
    %131 = tpu.matmul %129, %128, %cst_52 {dimension_numbers = #tpu.dot_dimension_numbers<[1], [0], [0], [1], [0, 0, 1, 1], [], []>} : vector<8x8xf32>, vector<8x64xf32>, vector<8x64xf32> -> vector<8x64xf32>
    %132 = vector.broadcast %130 : vector<8x1xf32> to vector<8x64xf32>
    %133 = arith.addf %131, %132 : vector<8x64xf32>
    %134 = arith.addf %97, %133 : vector<8x64xf32>
    %c160 = arith.constant 160 : index
    %c0_53 = arith.constant 0 : index
    %135 = vector.load %arg1[%c160, %c0_53] : memref<288x8xf32, #tpu.memory_space<vmem>>, vector<4x8xf32>
    %c164 = arith.constant 164 : index
    %c0_54 = arith.constant 0 : index
    %136 = vector.load %arg1[%c164, %c0_54] : memref<288x8xf32, #tpu.memory_space<vmem>>, vector<4x1xf32>
    %cst_55 = arith.constant dense<0.000000e+00> : vector<4x64xf32>
    %137 = tpu.matmul %135, %134, %cst_55 {dimension_numbers = #tpu.dot_dimension_numbers<[1], [0], [0], [1], [0, 0, 1, 1], [], []>} : vector<4x8xf32>, vector<8x64xf32>, vector<4x64xf32> -> vector<4x64xf32>
    %138 = vector.broadcast %136 : vector<4x1xf32> to vector<4x64xf32>
    %139 = arith.addf %137, %138 : vector<4x64xf32>
    %140 = vector.extract_strided_slice %139 {offsets = [0, 0], sizes = [4, 16], strides = [1, 1]} : vector<4x64xf32> to vector<4x16xf32>
    %141 = vector.extract_strided_slice %139 {offsets = [0, 16], sizes = [4, 16], strides = [1, 1]} : vector<4x64xf32> to vector<4x16xf32>
    %142 = arith.addf %140, %141 : vector<4x16xf32>
    %143 = vector.extract_strided_slice %139 {offsets = [0, 32], sizes = [4, 16], strides = [1, 1]} : vector<4x64xf32> to vector<4x16xf32>
    %144 = arith.addf %142, %143 : vector<4x16xf32>
    %145 = vector.extract_strided_slice %139 {offsets = [0, 48], sizes = [4, 16], strides = [1, 1]} : vector<4x64xf32> to vector<4x16xf32>
    %146 = arith.addf %144, %145 : vector<4x16xf32>
    %cst_56 = arith.constant 2.500000e-01 : f32
    %147 = vector.broadcast %cst_56 : f32 to vector<4x16xf32>
    %148 = arith.mulf %146, %147 : vector<4x16xf32>
    %c0_57 = arith.constant 0 : index
    %c0_58 = arith.constant 0 : index
    %c0_59 = arith.constant 0 : index
    %149 = vector.load %arg2[%c0_57, %c0_58, %c0_59] : memref<2x4x16xf32, #tpu.memory_space<vmem>>, vector<1x4x16xf32>
    %150 = vector.shape_cast %149 : vector<1x4x16xf32> to vector<4x16xf32>
    %151 = vector.shape_cast %148 : vector<4x16xf32> to vector<1x4x16xf32>
    tpu.vector_store %arg2[%c0_57, %c0_58, %c0_59], %151 {strides = array<i32>} : memref<2x4x16xf32, #tpu.memory_space<vmem>>, vector<1x4x16xf32>,
    %cst_60 = arith.constant dense<0xFF800000> : vector<16xf32>
    %152 = vector.multi_reduction <maximumf>, %148, %cst_60 [0] : vector<4x16xf32> to vector<16xf32>
    %153 = vector.shape_cast %152 : vector<16xf32> to vector<1x16xf32>
    %154 = vector.broadcast %153 : vector<1x16xf32> to vector<4x16xf32>
    %155 = arith.subf %148, %154 : vector<4x16xf32>
    %156 = math.exp %155 : vector<4x16xf32>
    %cst_61 = arith.constant dense<0.000000e+00> : vector<16xf32>
    %157 = vector.multi_reduction <add>, %156, %cst_61 [0] : vector<4x16xf32> to vector<16xf32>
    %158 = vector.shape_cast %157 : vector<16xf32> to vector<1x16xf32>
    %159 = vector.broadcast %158 : vector<1x16xf32> to vector<4x16xf32>
    %160 = arith.divf %156, %159 : vector<4x16xf32>
    %c168 = arith.constant 168 : index
    %c0_62 = arith.constant 0 : index
    %161 = vector.load %arg1[%c168, %c0_62] : memref<288x8xf32, #tpu.memory_space<vmem>>, vector<8x4xf32>
    %c176 = arith.constant 176 : index
    %c0_63 = arith.constant 0 : index
    %162 = vector.load %arg1[%c176, %c0_63] : memref<288x8xf32, #tpu.memory_space<vmem>>, vector<8x1xf32>
    %cst_64 = arith.constant dense<0.000000e+00> : vector<8x16xf32>
    %163 = tpu.matmul %161, %160, %cst_64 {dimension_numbers = #tpu.dot_dimension_numbers<[1], [0], [0], [1], [0, 0, 1, 1], [], []>} : vector<8x4xf32>, vector<4x16xf32>, vector<8x16xf32> -> vector<8x16xf32>
    %164 = vector.broadcast %162 : vector<8x1xf32> to vector<8x16xf32>
    %165 = arith.addf %163, %164 : vector<8x16xf32>
    %cst_65 = arith.constant 0.000000e+00 : f32
    %166 = vector.broadcast %cst_65 : f32 to vector<8x1xf32>
    %167 = vector.extract_strided_slice %165 {offsets = [0, 0], sizes = [8, 15], strides = [1, 1]} : vector<8x16xf32> to vector<8x15xf32>
    %168 = tpu.concatenate %166, %167 in 1 : vector<8x1xf32>, vector<8x15xf32> -> vector<8x16xf32>
    %c1_i32_66 = arith.constant 1 : i32
    %169 = vector.broadcast %c1_i32_66 : i32 to vector<1x16xi32>
    %170 = arith.cmpi sge, %17, %169 : vector<1x16xi32>
    %cst_67 = arith.constant 0.000000e+00 : f32
    %171 = vector.shape_cast %170 : vector<1x16xi1> to vector<1x16xi1>
    %172 = vector.broadcast %171 : vector<1x16xi1> to vector<8x16xi1>
    %173 = vector.broadcast %cst_67 : f32 to vector<8x16xf32>
    %174 = arith.select %172, %168, %173 : vector<8x16xi1>, vector<8x16xf32>
    %c184 = arith.constant 184 : index
    %c0_68 = arith.constant 0 : index
    %175 = vector.load %arg1[%c184, %c0_68] : memref<288x8xf32, #tpu.memory_space<vmem>>, vector<8x8xf32>
    %cst_69 = arith.constant dense<0.000000e+00> : vector<8x16xf32>
    %176 = tpu.matmul %175, %174, %cst_69 {dimension_numbers = #tpu.dot_dimension_numbers<[1], [0], [0], [1], [0, 0, 1, 1], [], []>} : vector<8x8xf32>, vector<8x16xf32>, vector<8x16xf32> -> vector<8x16xf32>
    %c192 = arith.constant 192 : index
    %c0_70 = arith.constant 0 : index
    %177 = vector.load %arg1[%c192, %c0_70] : memref<288x8xf32, #tpu.memory_space<vmem>>, vector<8x8xf32>
    %cst_71 = arith.constant dense<0.000000e+00> : vector<8x16xf32>
    %178 = tpu.matmul %177, %165, %cst_71 {dimension_numbers = #tpu.dot_dimension_numbers<[1], [0], [0], [1], [0, 0, 1, 1], [], []>} : vector<8x8xf32>, vector<8x16xf32>, vector<8x16xf32> -> vector<8x16xf32>
    %179 = arith.addf %176, %178 : vector<8x16xf32>
    %cst_72 = arith.constant 0.000000e+00 : f32
    %180 = vector.broadcast %cst_72 : f32 to vector<8x1xf32>
    %181 = vector.extract_strided_slice %165 {offsets = [0, 1], sizes = [8, 15], strides = [1, 1]} : vector<8x16xf32> to vector<8x15xf32>
    %182 = tpu.concatenate %181, %180 in 1 : vector<8x15xf32>, vector<8x1xf32> -> vector<8x16xf32>
    %c15_i32_73 = arith.constant 15 : i32
    %183 = vector.broadcast %c15_i32_73 : i32 to vector<1x16xi32>
    %184 = arith.cmpi slt, %17, %183 : vector<1x16xi32>
    %cst_74 = arith.constant 0.000000e+00 : f32
    %185 = vector.shape_cast %184 : vector<1x16xi1> to vector<1x16xi1>
    %186 = vector.broadcast %185 : vector<1x16xi1> to vector<8x16xi1>
    %187 = vector.broadcast %cst_74 : f32 to vector<8x16xf32>
    %188 = arith.select %186, %182, %187 : vector<8x16xi1>, vector<8x16xf32>
    %c200 = arith.constant 200 : index
    %c0_75 = arith.constant 0 : index
    %189 = vector.load %arg1[%c200, %c0_75] : memref<288x8xf32, #tpu.memory_space<vmem>>, vector<8x8xf32>
    %cst_76 = arith.constant dense<0.000000e+00> : vector<8x16xf32>
    %190 = tpu.matmul %189, %188, %cst_76 {dimension_numbers = #tpu.dot_dimension_numbers<[1], [0], [0], [1], [0, 0, 1, 1], [], []>} : vector<8x8xf32>, vector<8x16xf32>, vector<8x16xf32> -> vector<8x16xf32>
    %191 = arith.addf %179, %190 : vector<8x16xf32>
    %c208 = arith.constant 208 : index
    %c0_77 = arith.constant 0 : index
    %192 = vector.load %arg1[%c208, %c0_77] : memref<288x8xf32, #tpu.memory_space<vmem>>, vector<8x1xf32>
    %193 = vector.broadcast %192 : vector<8x1xf32> to vector<8x16xf32>
    %194 = arith.addf %191, %193 : vector<8x16xf32>
    %cst_78 = arith.constant 0.000000e+00 : f32
    %195 = vector.broadcast %cst_78 : f32 to vector<8x16xf32>
    %196 = arith.maximumf %194, %195 : vector<8x16xf32>
    %c216 = arith.constant 216 : index
    %c0_79 = arith.constant 0 : index
    %197 = vector.load %arg1[%c216, %c0_79] : memref<288x8xf32, #tpu.memory_space<vmem>>, vector<8x8xf32>
    %c224 = arith.constant 224 : index
    %c0_80 = arith.constant 0 : index
    %198 = vector.load %arg1[%c224, %c0_80] : memref<288x8xf32, #tpu.memory_space<vmem>>, vector<8x1xf32>
    %cst_81 = arith.constant dense<0.000000e+00> : vector<8x16xf32>
    %199 = tpu.matmul %197, %196, %cst_81 {dimension_numbers = #tpu.dot_dimension_numbers<[1], [0], [0], [1], [0, 0, 1, 1], [], []>} : vector<8x8xf32>, vector<8x16xf32>, vector<8x16xf32> -> vector<8x16xf32>
    %200 = vector.broadcast %198 : vector<8x1xf32> to vector<8x16xf32>
    %201 = arith.addf %199, %200 : vector<8x16xf32>
    %202 = arith.addf %165, %201 : vector<8x16xf32>
    %cst_82 = arith.constant 0.000000e+00 : f32
    %203 = vector.broadcast %cst_82 : f32 to vector<8x2xf32>
    %204 = vector.extract_strided_slice %202 {offsets = [0, 0], sizes = [8, 14], strides = [1, 1]} : vector<8x16xf32> to vector<8x14xf32>
    %205 = tpu.concatenate %203, %204 in 1 : vector<8x2xf32>, vector<8x14xf32> -> vector<8x16xf32>
    %c2_i32_83 = arith.constant 2 : i32
    %206 = vector.broadcast %c2_i32_83 : i32 to vector<1x16xi32>
    %207 = arith.cmpi sge, %17, %206 : vector<1x16xi32>
    %cst_84 = arith.constant 0.000000e+00 : f32
    %208 = vector.shape_cast %207 : vector<1x16xi1> to vector<1x16xi1>
    %209 = vector.broadcast %208 : vector<1x16xi1> to vector<8x16xi1>
    %210 = vector.broadcast %cst_84 : f32 to vector<8x16xf32>
    %211 = arith.select %209, %205, %210 : vector<8x16xi1>, vector<8x16xf32>
    %c232 = arith.constant 232 : index
    %c0_85 = arith.constant 0 : index
    %212 = vector.load %arg1[%c232, %c0_85] : memref<288x8xf32, #tpu.memory_space<vmem>>, vector<8x8xf32>
    %cst_86 = arith.constant dense<0.000000e+00> : vector<8x16xf32>
    %213 = tpu.matmul %212, %211, %cst_86 {dimension_numbers = #tpu.dot_dimension_numbers<[1], [0], [0], [1], [0, 0, 1, 1], [], []>} : vector<8x8xf32>, vector<8x16xf32>, vector<8x16xf32> -> vector<8x16xf32>
    %c240 = arith.constant 240 : index
    %c0_87 = arith.constant 0 : index
    %214 = vector.load %arg1[%c240, %c0_87] : memref<288x8xf32, #tpu.memory_space<vmem>>, vector<8x8xf32>
    %cst_88 = arith.constant dense<0.000000e+00> : vector<8x16xf32>
    %215 = tpu.matmul %214, %202, %cst_88 {dimension_numbers = #tpu.dot_dimension_numbers<[1], [0], [0], [1], [0, 0, 1, 1], [], []>} : vector<8x8xf32>, vector<8x16xf32>, vector<8x16xf32> -> vector<8x16xf32>
    %216 = arith.addf %213, %215 : vector<8x16xf32>
    %cst_89 = arith.constant 0.000000e+00 : f32
    %217 = vector.broadcast %cst_89 : f32 to vector<8x2xf32>
    %218 = vector.extract_strided_slice %202 {offsets = [0, 2], sizes = [8, 14], strides = [1, 1]} : vector<8x16xf32> to vector<8x14xf32>
    %219 = tpu.concatenate %218, %217 in 1 : vector<8x14xf32>, vector<8x2xf32> -> vector<8x16xf32>
    %c14_i32_90 = arith.constant 14 : i32
    %220 = vector.broadcast %c14_i32_90 : i32 to vector<1x16xi32>
    %221 = arith.cmpi slt, %17, %220 : vector<1x16xi32>
    %cst_91 = arith.constant 0.000000e+00 : f32
    %222 = vector.shape_cast %221 : vector<1x16xi1> to vector<1x16xi1>
    %223 = vector.broadcast %222 : vector<1x16xi1> to vector<8x16xi1>
    %224 = vector.broadcast %cst_91 : f32 to vector<8x16xf32>
    %225 = arith.select %223, %219, %224 : vector<8x16xi1>, vector<8x16xf32>
    %c248 = arith.constant 248 : index
    %c0_92 = arith.constant 0 : index
    %226 = vector.load %arg1[%c248, %c0_92] : memref<288x8xf32, #tpu.memory_space<vmem>>, vector<8x8xf32>
    %cst_93 = arith.constant dense<0.000000e+00> : vector<8x16xf32>
    %227 = tpu.matmul %226, %225, %cst_93 {dimension_numbers = #tpu.dot_dimension_numbers<[1], [0], [0], [1], [0, 0, 1, 1], [], []>} : vector<8x8xf32>, vector<8x16xf32>, vector<8x16xf32> -> vector<8x16xf32>
    %228 = arith.addf %216, %227 : vector<8x16xf32>
    %c256 = arith.constant 256 : index
    %c0_94 = arith.constant 0 : index
    %229 = vector.load %arg1[%c256, %c0_94] : memref<288x8xf32, #tpu.memory_space<vmem>>, vector<8x1xf32>
    %230 = vector.broadcast %229 : vector<8x1xf32> to vector<8x16xf32>
    %231 = arith.addf %228, %230 : vector<8x16xf32>
    %cst_95 = arith.constant 0.000000e+00 : f32
    %232 = vector.broadcast %cst_95 : f32 to vector<8x16xf32>
    %233 = arith.maximumf %231, %232 : vector<8x16xf32>
    %c264 = arith.constant 264 : index
    %c0_96 = arith.constant 0 : index
    %234 = vector.load %arg1[%c264, %c0_96] : memref<288x8xf32, #tpu.memory_space<vmem>>, vector<8x8xf32>
    %c272 = arith.constant 272 : index
    %c0_97 = arith.constant 0 : index
    %235 = vector.load %arg1[%c272, %c0_97] : memref<288x8xf32, #tpu.memory_space<vmem>>, vector<8x1xf32>
    %cst_98 = arith.constant dense<0.000000e+00> : vector<8x16xf32>
    %236 = tpu.matmul %234, %233, %cst_98 {dimension_numbers = #tpu.dot_dimension_numbers<[1], [0], [0], [1], [0, 0, 1, 1], [], []>} : vector<8x8xf32>, vector<8x16xf32>, vector<8x16xf32> -> vector<8x16xf32>
    %237 = vector.broadcast %235 : vector<8x1xf32> to vector<8x16xf32>
    %238 = arith.addf %236, %237 : vector<8x16xf32>
    %239 = arith.addf %202, %238 : vector<8x16xf32>
    %c280 = arith.constant 280 : index
    %c0_99 = arith.constant 0 : index
    %240 = vector.load %arg1[%c280, %c0_99] : memref<288x8xf32, #tpu.memory_space<vmem>>, vector<4x8xf32>
    %c284 = arith.constant 284 : index
    %c0_100 = arith.constant 0 : index
    %241 = vector.load %arg1[%c284, %c0_100] : memref<288x8xf32, #tpu.memory_space<vmem>>, vector<4x1xf32>
    %cst_101 = arith.constant dense<0.000000e+00> : vector<4x16xf32>
    %242 = tpu.matmul %240, %239, %cst_101 {dimension_numbers = #tpu.dot_dimension_numbers<[1], [0], [0], [1], [0, 0, 1, 1], [], []>} : vector<4x8xf32>, vector<8x16xf32>, vector<4x16xf32> -> vector<4x16xf32>
    %243 = vector.broadcast %241 : vector<4x1xf32> to vector<4x16xf32>
    %244 = arith.addf %242, %243 : vector<4x16xf32>
    %c1 = arith.constant 1 : index
    %c0_102 = arith.constant 0 : index
    %c0_103 = arith.constant 0 : index
    %245 = vector.load %arg2[%c1, %c0_102, %c0_103] : memref<2x4x16xf32, #tpu.memory_space<vmem>>, vector<1x4x16xf32>
    %246 = vector.shape_cast %245 : vector<1x4x16xf32> to vector<4x16xf32>
    %247 = vector.shape_cast %244 : vector<4x16xf32> to vector<1x4x16xf32>
    tpu.vector_store %arg2[%c1, %c0_102, %c0_103], %247 {strides = array<i32>} : memref<2x4x16xf32, #tpu.memory_space<vmem>>, vector<1x4x16xf32>,
    return
  }
}

</mosaic_0001>

<llo_original>
// kernel: tpu_custom_call.1
$region0: #{tpu_custom_call.1}
  #allocation0 [shape = 'u32[]', space=smem, size = 0x4, offset = 0x4, fixed_abs, tag = 'smem constant byte address 0x4 - core index']
  #allocation1 [shape = 'u32[144,128]{1,0:T(1,128)}', space=vmem, size = 0x12000, scoped, tag = 'internal scratch']
  %s0 = inlined_call_operand.vmem [shape: f32[8,64], index: 0, kind: input, shape index: {}]
  %s1 = inlined_call_operand.vmem [shape: f32[288,8], index: 1, kind: input, shape index: {}]
  %s2 = inlined_call_operand.hbm [shape: f32[2,4,16], index: 2, kind: output, shape index: {}]
  %s3 = sld [smem:[#allocation0]]
  $region18: #{tpu_custom_call.1} parent=0
    _
  %s5 = ssub.s32 1, %s3
  %s6 = scalar_select 0, %s5, %s3
  $region1: #{tpu_custom_call.1} parent=0
    #allocation2 [shape = 'u8[4096]{0}', space=vmem, size = 0x1000, scoped, tag = 'output window, operand 0, single buffered']
    #allocation3 [shape = 's32[1]{0}', space=sflag, size = 0x4, scoped, tag = 'scoped memory for tpu_custom_call.1']
    %7 = vsyncpa [#allocation3], 0
    // Predicated region
    $region2: #{tpu_custom_call.1} parent=1 // pred_check
      _
    $region3: #{tpu_custom_call.1} parent=1 // pred_check_branch
      %9 = sbr.rel (0) target = $region5
    $region4: #{tpu_custom_call.1} parent=1 // pred_region
      _
    $region5: #{tpu_custom_call.1} parent=1 // pred_fallthru
      _
    // Predicated region
    $region6: #{tpu_custom_call.1} parent=1 // pred_check
      _
    $region7: #{tpu_custom_call.1} parent=1 // pred_check_branch
      %11 = sbr.rel (0) target = $region9
    $region8: #{tpu_custom_call.1} parent=1 // pred_region
      _
    $region9: #{tpu_custom_call.1} parent=1 // pred_fallthru
      _
    %v12 = vlaneseq
    %v13 = vand.u32 %v12, 127
    %vm14 = vcmp.lt.s32.totalorder %v13, 0
    %v15 = vsub.s32 0, %v13
    %v16 = vsel %vm14, %v15, %v13
    %v17 = vshrl.u32 %v16, 4
    %v18 = vand.u32 %v16, 15
    %v19 = vsub.s32 0, %v18
    %v20 = vsel %vm14, %v19, %v18
    %vm21 = vcmp.ne.s32.totalorder %v20, 0
    %vm22 = vcmp.lt.s32.totalorder %v20, 0
    %vm23 = vmand %vm22, %vm21
    %v24 = vadd.s32 %v20, 16
    %v25 = vsel %vm23, %v24, %v20
    %v26 = vld [vmem:[%s0] sm:$0xff]
    %v27 = vld [vmem:[%s1] sm:$0xff]
    %v28 = vld [vmem:[%s1 + $0x8] sm:$0xff]
    %30 = vset.pattern.permute.xlu0 0
    %31 = vperm.xlu0 %30, %v28
    %v32 = vpop.permute.xlu0 %31
    %vm34 = vcmask 64512
    %v36 = vsel %vm34, %v27, 0
    %38 = vmatprep.subr.mxu0 0.0
    %39 = vmatpush1.msra.mxu0 %v26
    %40 = vmatprep.subr.mxu0 0.0
    %41 = vmatpush1.msra.mxu0 0.0
    %42 = vmatprep.subr.mxu0 0.0
    %43 = vmatpush1.msra.mxu0 0.0
    %44 = vmatprep.subr.mxu0 0.0
    %45 = vmatpush1.msra.mxu0 0.0
    %46 = vmatprep.subr.mxu0 0.0
    %47 = vmatpush1.msra.mxu0 0.0
    %48 = vmatprep.subr.mxu0 0.0
    %49 = vmatpush1.msra.mxu0 0.0
    %50 = vmatprep.subr.mxu0 0.0
    %51 = vmatpush1.msra.mxu0 0.0
    %52 = vmatprep.subr.mxu0 0.0
    %53 = vmatpush1.msra.mxu0 0.0
    %54 = vmatprep.subr.mxu0 0.0
    %55 = vmatpush1.msra.mxu0 0.0
    %56 = vmatprep.subr.mxu0 0.0
    %57 = vmatpush1.msra.mxu0 0.0
    %58 = vmatprep.subr.mxu0 0.0
    %59 = vmatpush1.msra.mxu0 0.0
    %60 = vmatprep.subr.mxu0 0.0
    %61 = vmatpush1.msra.mxu0 0.0
    %62 = vmatprep.subr.mxu0 0.0
    %63 = vmatpush1.msra.mxu0 0.0
    %64 = vmatprep.subr.mxu0 0.0
    %65 = vmatpush1.msra.mxu0 0.0
    %66 = vmatprep.subr.mxu0 0.0
    %67 = vmatpush1.msra.mxu0 0.0
    %68 = vmatprep.subr.mxu0 0.0
    %69 = vmatpush1.msra.mxu0 0.0
    %70 = vmatprep.subr.mxu0 0.0
    %71 = vmatpush1.msra.mxu0 0.0
    %72 = vmatprep.subr.mxu0 0.0
    %73 = vmatpush1.msra.mxu0 0.0
    %74 = vmatprep.subr.mxu0 0.0
    %75 = vmatpush1.msra.mxu0 0.0
    %76 = vmatprep.subr.mxu0 0.0
    %77 = vmatpush1.msra.mxu0 0.0
    %78 = vmatprep.subr.mxu0 0.0
    %79 = vmatpush1.msra.mxu0 0.0
    %80 = vmatprep.subr.mxu0 0.0
    %81 = vmatpush1.msra.mxu0 0.0
    %82 = vmatprep.subr.mxu0 0.0
    %83 = vmatpush1.msra.mxu0 0.0
    %84 = vmatprep.subr.mxu0 0.0
    %85 = vmatpush1.msra.mxu0 0.0
    %86 = vmatprep.subr.mxu0 0.0
    %87 = vmatpush1.msra.mxu0 0.0
    %88 = vmatprep.subr.mxu0 0.0
    %89 = vmatpush1.msra.mxu0 0.0
    %90 = vmatprep.subr.mxu0 0.0
    %91 = vmatpush1.msra.mxu0 0.0
    %92 = vmatprep.subr.mxu0 0.0
    %93 = vmatpush1.msra.mxu0 0.0
    %94 = vmatprep.subr.mxu0 0.0
    %95 = vmatpush1.msra.mxu0 0.0
    %96 = vmatprep.subr.mxu0 0.0
    %97 = vmatpush1.msra.mxu0 0.0
    %98 = vmatprep.subr.mxu0 0.0
    %99 = vmatpush1.msra.mxu0 0.0
    %100 = vmatprep.subr.mxu0 0.0
    %101 = vmatpush1.msra.mxu0 0.0
    %102 = vmatprep.mubr.f32.mxu0 0.0
    %103 = vmatmul.mubr.f32.gmra.mrb[0].mxu0 %v36
    %v104 = vpop.f32.mrb[0].mxu0
    %v105 = vadd.f32 %v32, %v104
    %v106 = vpop.f32.mrb[0].mxu0
    %107 = vdwg.mxu0
    %109 = vrot.lane.b32.xlu0 %v105, 1
    %v110 = vpop.permute.xlu0 %109
    %vm112 = vcmask 7168
    %v113 = vsel %vm112, 0.0, %v110
    %vm114 = vcmp.ge.s32.totalorder %v25, 1
    %v115 = vsel %vm114, 1, 0
    %vm116 = vcmp.eq.s32.totalorder %v115, 1
    %v117 = vsel %vm116, %v113, 0.0
    %v118 = vld [vmem:[%s1 + $0x10] sm:$0xff]
    %v119 = vld [vmem:[%s1 + $0x18] sm:$0xff]
    %v121 = vsel %vm34, %v119, 0
    %123 = vmatprep.subr.mxu0 0.0
    %124 = vmatpush1.msra.mxu0 %v105
    %125 = vmatprep.subr.mxu0 0.0
    %126 = vmatpush1.msra.mxu0 0.0
    %127 = vmatprep.subr.mxu0 0.0
    %128 = vmatpush1.msra.mxu0 0.0
    %129 = vmatprep.subr.mxu0 0.0
    %130 = vmatpush1.msra.mxu0 0.0
    %131 = vmatprep.subr.mxu0 0.0
    %132 = vmatpush1.msra.mxu0 0.0
    %133 = vmatprep.subr.mxu0 0.0
    %134 = vmatpush1.msra.mxu0 0.0
    %135 = vmatprep.subr.mxu0 0.0
    %136 = vmatpush1.msra.mxu0 0.0
    %137 = vmatprep.subr.mxu0 0.0
    %138 = vmatpush1.msra.mxu0 0.0
    %139 = vmatprep.subr.mxu0 0.0
    %140 = vmatpush1.msra.mxu0 0.0
    %141 = vmatprep.subr.mxu0 0.0
    %142 = vmatpush1.msra.mxu0 0.0
    %143 = vmatprep.subr.mxu0 0.0
    %144 = vmatpush1.msra.mxu0 0.0
    %145 = vmatprep.subr.mxu0 0.0
    %146 = vmatpush1.msra.mxu0 0.0
    %147 = vmatprep.subr.mxu0 0.0
    %148 = vmatpush1.msra.mxu0 0.0
    %149 = vmatprep.subr.mxu0 0.0
    %150 = vmatpush1.msra.mxu0 0.0
    %151 = vmatprep.subr.mxu0 0.0
    %152 = vmatpush1.msra.mxu0 0.0
    %153 = vmatprep.subr.mxu0 0.0
    %154 = vmatpush1.msra.mxu0 0.0
    %155 = vmatprep.subr.mxu0 0.0
    %156 = vmatpush1.msra.mxu0 0.0
    %157 = vmatprep.subr.mxu0 0.0
    %158 = vmatpush1.msra.mxu0 0.0
    %159 = vmatprep.subr.mxu0 0.0
    %160 = vmatpush1.msra.mxu0 0.0
    %161 = vmatprep.subr.mxu0 0.0
    %162 = vmatpush1.msra.mxu0 0.0
    %163 = vmatprep.subr.mxu0 0.0
    %164 = vmatpush1.msra.mxu0 0.0
    %165 = vmatprep.subr.mxu0 0.0
    %166 = vmatpush1.msra.mxu0 0.0
    %167 = vmatprep.subr.mxu0 0.0
    %168 = vmatpush1.msra.mxu0 0.0
    %169 = vmatprep.subr.mxu0 0.0
    %170 = vmatpush1.msra.mxu0 0.0
    %171 = vmatprep.subr.mxu0 0.0
    %172 = vmatpush1.msra.mxu0 0.0
    %173 = vmatprep.subr.mxu0 0.0
    %174 = vmatpush1.msra.mxu0 0.0
    %175 = vmatprep.subr.mxu0 0.0
    %176 = vmatpush1.msra.mxu0 0.0
    %177 = vmatprep.subr.mxu0 0.0
    %178 = vmatpush1.msra.mxu0 0.0
    %179 = vmatprep.subr.mxu0 0.0
    %180 = vmatpush1.msra.mxu0 0.0
    %181 = vmatprep.subr.mxu0 0.0
    %182 = vmatpush1.msra.mxu0 0.0
    %183 = vmatprep.subr.mxu0 0.0
    %184 = vmatpush1.msra.mxu0 0.0
    %185 = vmatprep.subr.mxu0 0.0
    %186 = vmatpush1.msra.mxu0 0.0
    %187 = vmatprep.mubr.f32.mxu0 0.0
    %188 = vmatmul.mubr.f32.gmra.mrb[0].mxu0 %v121
    %v189 = vpop.f32.mrb[0].mxu0
    %v190 = vadd.f32 0.0, %v189
    %v191 = vpop.f32.mrb[0].mxu0
    %192 = vdwg.mxu0
    %v194 = vsel %vm34, %v118, 0
    %196 = vmatprep.subr.mxu0 0.0
    %197 = vmatpush1.msra.mxu0 %v117
    %198 = vmatprep.subr.mxu0 0.0
    %199 = vmatpush1.msra.mxu0 0.0
    %200 = vmatprep.subr.mxu0 0.0
    %201 = vmatpush1.msra.mxu0 0.0
    %202 = vmatprep.subr.mxu0 0.0
    %203 = vmatpush1.msra.mxu0 0.0
    %204 = vmatprep.subr.mxu0 0.0
    %205 = vmatpush1.msra.mxu0 0.0
    %206 = vmatprep.subr.mxu0 0.0
    %207 = vmatpush1.msra.mxu0 0.0
    %208 = vmatprep.subr.mxu0 0.0
    %209 = vmatpush1.msra.mxu0 0.0
    %210 = vmatprep.subr.mxu0 0.0
    %211 = vmatpush1.msra.mxu0 0.0
    %212 = vmatprep.subr.mxu0 0.0
    %213 = vmatpush1.msra.mxu0 0.0
    %214 = vmatprep.subr.mxu0 0.0
    %215 = vmatpush1.msra.mxu0 0.0
    %216 = vmatprep.subr.mxu0 0.0
    %217 = vmatpush1.msra.mxu0 0.0
    %218 = vmatprep.subr.mxu0 0.0
    %219 = vmatpush1.msra.mxu0 0.0
    %220 = vmatprep.subr.mxu0 0.0
    %221 = vmatpush1.msra.mxu0 0.0
    %222 = vmatprep.subr.mxu0 0.0
    %223 = vmatpush1.msra.mxu0 0.0
    %224 = vmatprep.subr.mxu0 0.0
    %225 = vmatpush1.msra.mxu0 0.0
    %226 = vmatprep.subr.mxu0 0.0
    %227 = vmatpush1.msra.mxu0 0.0
    %228 = vmatprep.subr.mxu0 0.0
    %229 = vmatpush1.msra.mxu0 0.0
    %230 = vmatprep.subr.mxu0 0.0
    %231 = vmatpush1.msra.mxu0 0.0
    %232 = vmatprep.subr.mxu0 0.0
    %233 = vmatpush1.msra.mxu0 0.0
    %234 = vmatprep.subr.mxu0 0.0
    %235 = vmatpush1.msra.mxu0 0.0
    %236 = vmatprep.subr.mxu0 0.0
    %237 = vmatpush1.msra.mxu0 0.0
    %238 = vmatprep.subr.mxu0 0.0
    %239 = vmatpush1.msra.mxu0 0.0
    %240 = vmatprep.subr.mxu0 0.0
    %241 = vmatpush1.msra.mxu0 0.0
    %242 = vmatprep.subr.mxu0 0.0
    %243 = vmatpush1.msra.mxu0 0.0
    %244 = vmatprep.subr.mxu0 0.0
    %245 = vmatpush1.msra.mxu0 0.0
    %246 = vmatprep.subr.mxu0 0.0
    %247 = vmatpush1.msra.mxu0 0.0
    %248 = vmatprep.subr.mxu0 0.0
    %249 = vmatpush1.msra.mxu0 0.0
    %250 = vmatprep.subr.mxu0 0.0
    %251 = vmatpush1.msra.mxu0 0.0
    %252 = vmatprep.subr.mxu0 0.0
    %253 = vmatpush1.msra.mxu0 0.0
    %254 = vmatprep.subr.mxu0 0.0
    %255 = vmatpush1.msra.mxu0 0.0
    %256 = vmatprep.subr.mxu0 0.0
    %257 = vmatpush1.msra.mxu0 0.0
    %258 = vmatprep.subr.mxu0 0.0
    %259 = vmatpush1.msra.mxu0 0.0
    %260 = vmatprep.mubr.f32.mxu0 0.0
    %261 = vmatmul.mubr.f32.gmra.mrb[0].mxu0 %v194
    %v262 = vpop.f32.mrb[0].mxu0
    %v263 = vadd.f32 %v190, %v262
    %v264 = vpop.f32.mrb[0].mxu0
    %265 = vdwg.mxu0
    %266 = vrot.lane.b32.xlu0 %v105, 127
    %v267 = vpop.permute.xlu0 %266
    %vm269 = vcmask 515072
    %v270 = vsel %vm269, %v267, 0.0
    %vm271 = vcmp.lt.s32.totalorder %v25, 15
    %v272 = vsel %vm271, 1, 0
    %vm273 = vcmp.eq.s32.totalorder %v272, 1
    %v274 = vsel %vm273, %v270, 0.0
    %v275 = vld [vmem:[%s1 + $0x20] sm:$0xff]
    %v277 = vsel %vm34, %v275, 0
    %279 = vmatprep.subr.mxu0 0.0
    %280 = vmatpush1.msra.mxu0 %v274
    %281 = vmatprep.subr.mxu0 0.0
    %282 = vmatpush1.msra.mxu0 0.0
    %283 = vmatprep.subr.mxu0 0.0
    %284 = vmatpush1.msra.mxu0 0.0
    %285 = vmatprep.subr.mxu0 0.0
    %286 = vmatpush1.msra.mxu0 0.0
    %287 = vmatprep.subr.mxu0 0.0
    %288 = vmatpush1.msra.mxu0 0.0
    %289 = vmatprep.subr.mxu0 0.0
    %290 = vmatpush1.msra.mxu0 0.0
    %291 = vmatprep.subr.mxu0 0.0
    %292 = vmatpush1.msra.mxu0 0.0
    %293 = vmatprep.subr.mxu0 0.0
    %294 = vmatpush1.msra.mxu0 0.0
    %295 = vmatprep.subr.mxu0 0.0
    %296 = vmatpush1.msra.mxu0 0.0
    %297 = vmatprep.subr.mxu0 0.0
    %298 = vmatpush1.msra.mxu0 0.0
    %299 = vmatprep.subr.mxu0 0.0
    %300 = vmatpush1.msra.mxu0 0.0
    %301 = vmatprep.subr.mxu0 0.0
    %302 = vmatpush1.msra.mxu0 0.0
    %303 = vmatprep.subr.mxu0 0.0
    %304 = vmatpush1.msra.mxu0 0.0
    %305 = vmatprep.subr.mxu0 0.0
    %306 = vmatpush1.msra.mxu0 0.0
    %307 = vmatprep.subr.mxu0 0.0
    %308 = vmatpush1.msra.mxu0 0.0
    %309 = vmatprep.subr.mxu0 0.0
    %310 = vmatpush1.msra.mxu0 0.0
    %311 = vmatprep.subr.mxu0 0.0
    %312 = vmatpush1.msra.mxu0 0.0
    %313 = vmatprep.subr.mxu0 0.0
    %314 = vmatpush1.msra.mxu0 0.0
    %315 = vmatprep.subr.mxu0 0.0
    %316 = vmatpush1.msra.mxu0 0.0
    %317 = vmatprep.subr.mxu0 0.0
    %318 = vmatpush1.msra.mxu0 0.0
    %319 = vmatprep.subr.mxu0 0.0
    %320 = vmatpush1.msra.mxu0 0.0
    %321 = vmatprep.subr.mxu0 0.0
    %322 = vmatpush1.msra.mxu0 0.0
    %323 = vmatprep.subr.mxu0 0.0
    %324 = vmatpush1.msra.mxu0 0.0
    %325 = vmatprep.subr.mxu0 0.0
    %326 = vmatpush1.msra.mxu0 0.0
    %327 = vmatprep.subr.mxu0 0.0
    %328 = vmatpush1.msra.mxu0 0.0
    %329 = vmatprep.subr.mxu0 0.0
    %330 = vmatpush1.msra.mxu0 0.0
    %331 = vmatprep.subr.mxu0 0.0
    %332 = vmatpush1.msra.mxu0 0.0
    %333 = vmatprep.subr.mxu0 0.0
    %334 = vmatpush1.msra.mxu0 0.0
    %335 = vmatprep.subr.mxu0 0.0
    %336 = vmatpush1.msra.mxu0 0.0
    %337 = vmatprep.subr.mxu0 0.0
    %338 = vmatpush1.msra.mxu0 0.0
    %339 = vmatprep.subr.mxu0 0.0
    %340 = vmatpush1.msra.mxu0 0.0
    %341 = vmatprep.subr.mxu0 0.0
    %342 = vmatpush1.msra.mxu0 0.0
    %343 = vmatprep.mubr.f32.mxu0 0.0
    %344 = vmatmul.mubr.f32.gmra.mrb[0].mxu0 %v277
    %v345 = vpop.f32.mrb[0].mxu0
    %v346 = vadd.f32 0.0, %v345
    %v347 = vpop.f32.mrb[0].mxu0
    %348 = vdwg.mxu0
    %v349 = vadd.f32 %v263, %v346
    %v350 = vld [vmem:[%s1 + $0x28] sm:$0xff]
    %352 = vset.pattern.permute.xlu0 0
    %353 = vperm.xlu0 %352, %v350
    %v354 = vpop.permute.xlu0 %353
    %v356 = vadd.f32 %v349, %v354
    %v357 = vmax.f32 %v356, 0.0
    %v358 = vld [vmem:[%s1 + $0x30] sm:$0xff]
    %v359 = vld [vmem:[%s1 + $0x38] sm:$0xff]
    %361 = vset.pattern.permute.xlu0 0
    %362 = vperm.xlu0 %361, %v359
    %v363 = vpop.permute.xlu0 %362
    %v366 = vsel %vm34, %v358, 0
    %368 = vmatprep.subr.mxu0 0.0
    %369 = vmatpush1.msra.mxu0 %v357
    %370 = vmatprep.subr.mxu0 0.0
    %371 = vmatpush1.msra.mxu0 0.0
    %372 = vmatprep.subr.mxu0 0.0
    %373 = vmatpush1.msra.mxu0 0.0
    %374 = vmatprep.subr.mxu0 0.0
    %375 = vmatpush1.msra.mxu0 0.0
    %376 = vmatprep.subr.mxu0 0.0
    %377 = vmatpush1.msra.mxu0 0.0
    %378 = vmatprep.subr.mxu0 0.0
    %379 = vmatpush1.msra.mxu0 0.0
    %380 = vmatprep.subr.mxu0 0.0
    %381 = vmatpush1.msra.mxu0 0.0
    %382 = vmatprep.subr.mxu0 0.0
    %383 = vmatpush1.msra.mxu0 0.0
    %384 = vmatprep.subr.mxu0 0.0
    %385 = vmatpush1.msra.mxu0 0.0
    %386 = vmatprep.subr.mxu0 0.0
    %387 = vmatpush1.msra.mxu0 0.0
    %388 = vmatprep.subr.mxu0 0.0
    %389 = vmatpush1.msra.mxu0 0.0
    %390 = vmatprep.subr.mxu0 0.0
    %391 = vmatpush1.msra.mxu0 0.0
    %392 = vmatprep.subr.mxu0 0.0
    %393 = vmatpush1.msra.mxu0 0.0
    %394 = vmatprep.subr.mxu0 0.0
    %395 = vmatpush1.msra.mxu0 0.0
    %396 = vmatprep.subr.mxu0 0.0
    %397 = vmatpush1.msra.mxu0 0.0
    %398 = vmatprep.subr.mxu0 0.0
    %399 = vmatpush1.msra.mxu0 0.0
    %400 = vmatprep.subr.mxu0 0.0
    %401 = vmatpush1.msra.mxu0 0.0
    %402 = vmatprep.subr.mxu0 0.0
    %403 = vmatpush1.msra.mxu0 0.0
    %404 = vmatprep.subr.mxu0 0.0
    %405 = vmatpush1.msra.mxu0 0.0
    %406 = vmatprep.subr.mxu0 0.0
    %407 = vmatpush1.msra.mxu0 0.0
    %408 = vmatprep.subr.mxu0 0.0
    %409 = vmatpush1.msra.mxu0 0.0
    %410 = vmatprep.subr.mxu0 0.0
    %411 = vmatpush1.msra.mxu0 0.0
    %412 = vmatprep.subr.mxu0 0.0
    %413 = vmatpush1.msra.mxu0 0.0
    %414 = vmatprep.subr.mxu0 0.0
    %415 = vmatpush1.msra.mxu0 0.0
    %416 = vmatprep.subr.mxu0 0.0
    %417 = vmatpush1.msra.mxu0 0.0
    %418 = vmatprep.subr.mxu0 0.0
    %419 = vmatpush1.msra.mxu0 0.0
    %420 = vmatprep.subr.mxu0 0.0
    %421 = vmatpush1.msra.mxu0 0.0
    %422 = vmatprep.subr.mxu0 0.0
    %423 = vmatpush1.msra.mxu0 0.0
    %424 = vmatprep.subr.mxu0 0.0
    %425 = vmatpush1.msra.mxu0 0.0
    %426 = vmatprep.subr.mxu0 0.0
    %427 = vmatpush1.msra.mxu0 0.0
    %428 = vmatprep.subr.mxu0 0.0
    %429 = vmatpush1.msra.mxu0 0.0
    %430 = vmatprep.subr.mxu0 0.0
    %431 = vmatpush1.msra.mxu0 0.0
    %432 = vmatprep.mubr.f32.mxu0 0.0
    %433 = vmatmul.mubr.f32.gmra.mrb[0].mxu0 %v366
    %v434 = vpop.f32.mrb[0].mxu0
    %v435 = vadd.f32 %v363, %v434
    %v436 = vpop.f32.mrb[0].mxu0
    %437 = vdwg.mxu0
    %v438 = vadd.f32 %v105, %v435
    %440 = vrot.lane.b32.xlu0 %v438, 2
    %v441 = vpop.permute.xlu0 %440
    %vm443 = vcmask 15360
    %v444 = vsel %vm443, 0.0, %v441
    %vm445 = vcmp.ge.s32.totalorder %v25, 2
    %v446 = vsel %vm445, 1, 0
    %vm447 = vcmp.eq.s32.totalorder %v446, 1
    %v448 = vsel %vm447, %v444, 0.0
    %v449 = vld [vmem:[%s1 + $0x40] sm:$0xff]
    %v450 = vld [vmem:[%s1 + $0x48] sm:$0xff]
    %v452 = vsel %vm34, %v450, 0
    %454 = vmatprep.subr.mxu0 0.0
    %455 = vmatpush1.msra.mxu0 %v438
    %456 = vmatprep.subr.mxu0 0.0
    %457 = vmatpush1.msra.mxu0 0.0
    %458 = vmatprep.subr.mxu0 0.0
    %459 = vmatpush1.msra.mxu0 0.0
    %460 = vmatprep.subr.mxu0 0.0
    %461 = vmatpush1.msra.mxu0 0.0
    %462 = vmatprep.subr.mxu0 0.0
    %463 = vmatpush1.msra.mxu0 0.0
    %464 = vmatprep.subr.mxu0 0.0
    %465 = vmatpush1.msra.mxu0 0.0
    %466 = vmatprep.subr.mxu0 0.0
    %467 = vmatpush1.msra.mxu0 0.0
    %468 = vmatprep.subr.mxu0 0.0
    %469 = vmatpush1.msra.mxu0 0.0
    %470 = vmatprep.subr.mxu0 0.0
    %471 = vmatpush1.msra.mxu0 0.0
    %472 = vmatprep.subr.mxu0 0.0
    %473 = vmatpush1.msra.mxu0 0.0
    %474 = vmatprep.subr.mxu0 0.0
    %475 = vmatpush1.msra.mxu0 0.0
    %476 = vmatprep.subr.mxu0 0.0
    %477 = vmatpush1.msra.mxu0 0.0
    %478 = vmatprep.subr.mxu0 0.0
    %479 = vmatpush1.msra.mxu0 0.0
    %480 = vmatprep.subr.mxu0 0.0
    %481 = vmatpush1.msra.mxu0 0.0
    %482 = vmatprep.subr.mxu0 0.0
    %483 = vmatpush1.msra.mxu0 0.0
    %484 = vmatprep.subr.mxu0 0.0
    %485 = vmatpush1.msra.mxu0 0.0
    %486 = vmatprep.subr.mxu0 0.0
    %487 = vmatpush1.msra.mxu0 0.0
    %488 = vmatprep.subr.mxu0 0.0
    %489 = vmatpush1.msra.mxu0 0.0
    %490 = vmatprep.subr.mxu0 0.0
    %491 = vmatpush1.msra.mxu0 0.0
    %492 = vmatprep.subr.mxu0 0.0
    %493 = vmatpush1.msra.mxu0 0.0
    %494 = vmatprep.subr.mxu0 0.0
    %495 = vmatpush1.msra.mxu0 0.0
    %496 = vmatprep.subr.mxu0 0.0
    %497 = vmatpush1.msra.mxu0 0.0
    %498 = vmatprep.subr.mxu0 0.0
    %499 = vmatpush1.msra.mxu0 0.0
    %500 = vmatprep.subr.mxu0 0.0
    %501 = vmatpush1.msra.mxu0 0.0
    %502 = vmatprep.subr.mxu0 0.0
    %503 = vmatpush1.msra.mxu0 0.0
    %504 = vmatprep.subr.mxu0 0.0
    %505 = vmatpush1.msra.mxu0 0.0
    %506 = vmatprep.subr.mxu0 0.0
    %507 = vmatpush1.msra.mxu0 0.0
    %508 = vmatprep.subr.mxu0 0.0
    %509 = vmatpush1.msra.mxu0 0.0
    %510 = vmatprep.subr.mxu0 0.0
    %511 = vmatpush1.msra.mxu0 0.0
    %512 = vmatprep.subr.mxu0 0.0
    %513 = vmatpush1.msra.mxu0 0.0
    %514 = vmatprep.subr.mxu0 0.0
    %515 = vmatpush1.msra.mxu0 0.0
    %516 = vmatprep.subr.mxu0 0.0
    %517 = vmatpush1.msra.mxu0 0.0
    %518 = vmatprep.mubr.f32.mxu0 0.0
    %519 = vmatmul.mubr.f32.gmra.mrb[0].mxu0 %v452
    %v520 = vpop.f32.mrb[0].mxu0
    %v521 = vadd.f32 0.0, %v520
    %v522 = vpop.f32.mrb[0].mxu0
    %523 = vdwg.mxu0
    %v525 = vsel %vm34, %v449, 0
    %527 = vmatprep.subr.mxu0 0.0
    %528 = vmatpush1.msra.mxu0 %v448
    %529 = vmatprep.subr.mxu0 0.0
    %530 = vmatpush1.msra.mxu0 0.0
    %531 = vmatprep.subr.mxu0 0.0
    %532 = vmatpush1.msra.mxu0 0.0
    %533 = vmatprep.subr.mxu0 0.0
    %534 = vmatpush1.msra.mxu0 0.0
    %535 = vmatprep.subr.mxu0 0.0
    %536 = vmatpush1.msra.mxu0 0.0
    %537 = vmatprep.subr.mxu0 0.0
    %538 = vmatpush1.msra.mxu0 0.0
    %539 = vmatprep.subr.mxu0 0.0
    %540 = vmatpush1.msra.mxu0 0.0
    %541 = vmatprep.subr.mxu0 0.0
    %542 = vmatpush1.msra.mxu0 0.0
    %543 = vmatprep.subr.mxu0 0.0
    %544 = vmatpush1.msra.mxu0 0.0
    %545 = vmatprep.subr.mxu0 0.0
    %546 = vmatpush1.msra.mxu0 0.0
    %547 = vmatprep.subr.mxu0 0.0
    %548 = vmatpush1.msra.mxu0 0.0
    %549 = vmatprep.subr.mxu0 0.0
    %550 = vmatpush1.msra.mxu0 0.0
    %551 = vmatprep.subr.mxu0 0.0
    %552 = vmatpush1.msra.mxu0 0.0
    %553 = vmatprep.subr.mxu0 0.0
    %554 = vmatpush1.msra.mxu0 0.0
    %555 = vmatprep.subr.mxu0 0.0
    %556 = vmatpush1.msra.mxu0 0.0
    %557 = vmatprep.subr.mxu0 0.0
    %558 = vmatpush1.msra.mxu0 0.0
    %559 = vmatprep.subr.mxu0 0.0
    %560 = vmatpush1.msra.mxu0 0.0
    %561 = vmatprep.subr.mxu0 0.0
    %562 = vmatpush1.msra.mxu0 0.0
    %563 = vmatprep.subr.mxu0 0.0
    %564 = vmatpush1.msra.mxu0 0.0
    %565 = vmatprep.subr.mxu0 0.0
    %566 = vmatpush1.msra.mxu0 0.0
    %567 = vmatprep.subr.mxu0 0.0
    %568 = vmatpush1.msra.mxu0 0.0
    %569 = vmatprep.subr.mxu0 0.0
    %570 = vmatpush1.msra.mxu0 0.0
    %571 = vmatprep.subr.mxu0 0.0
    %572 = vmatpush1.msra.mxu0 0.0
    %573 = vmatprep.subr.mxu0 0.0
    %574 = vmatpush1.msra.mxu0 0.0
    %575 = vmatprep.subr.mxu0 0.0
    %576 = vmatpush1.msra.mxu0 0.0
    %577 = vmatprep.subr.mxu0 0.0
    %578 = vmatpush1.msra.mxu0 0.0
    %579 = vmatprep.subr.mxu0 0.0
    %580 = vmatpush1.msra.mxu0 0.0
    %581 = vmatprep.subr.mxu0 0.0
    %582 = vmatpush1.msra.mxu0 0.0
    %583 = vmatprep.subr.mxu0 0.0
    %584 = vmatpush1.msra.mxu0 0.0
    %585 = vmatprep.subr.mxu0 0.0
    %586 = vmatpush1.msra.mxu0 0.0
    %587 = vmatprep.subr.mxu0 0.0
    %588 = vmatpush1.msra.mxu0 0.0
    %589 = vmatprep.subr.mxu0 0.0
    %590 = vmatpush1.msra.mxu0 0.0
    %591 = vmatprep.mubr.f32.mxu0 0.0
    %592 = vmatmul.mubr.f32.gmra.mrb[0].mxu0 %v525
    %v593 = vpop.f32.mrb[0].mxu0
    %v594 = vadd.f32 %v521, %v593
    %v595 = vpop.f32.mrb[0].mxu0
    %596 = vdwg.mxu0
    %597 = vrot.lane.b32.xlu0 %v438, 126
    %v598 = vpop.permute.xlu0 %597
    %vm600 = vcmask 506880
    %v601 = vsel %vm600, %v598, 0.0
    %vm602 = vcmp.lt.s32.totalorder %v25, 14
    %v603 = vsel %vm602, 1, 0
    %vm604 = vcmp.eq.s32.totalorder %v603, 1
    %v605 = vsel %vm604, %v601, 0.0
    %v606 = vld [vmem:[%s1 + $0x50] sm:$0xff]
    %v608 = vsel %vm34, %v606, 0
    %610 = vmatprep.subr.mxu0 0.0
    %611 = vmatpush1.msra.mxu0 %v605
    %612 = vmatprep.subr.mxu0 0.0
    %613 = vmatpush1.msra.mxu0 0.0
    %614 = vmatprep.subr.mxu0 0.0
    %615 = vmatpush1.msra.mxu0 0.0
    %616 = vmatprep.subr.mxu0 0.0
    %617 = vmatpush1.msra.mxu0 0.0
    %618 = vmatprep.subr.mxu0 0.0
    %619 = vmatpush1.msra.mxu0 0.0
    %620 = vmatprep.subr.mxu0 0.0
    %621 = vmatpush1.msra.mxu0 0.0
    %622 = vmatprep.subr.mxu0 0.0
    %623 = vmatpush1.msra.mxu0 0.0
    %624 = vmatprep.subr.mxu0 0.0
    %625 = vmatpush1.msra.mxu0 0.0
    %626 = vmatprep.subr.mxu0 0.0
    %627 = vmatpush1.msra.mxu0 0.0
    %628 = vmatprep.subr.mxu0 0.0
    %629 = vmatpush1.msra.mxu0 0.0
    %630 = vmatprep.subr.mxu0 0.0
    %631 = vmatpush1.msra.mxu0 0.0
    %632 = vmatprep.subr.mxu0 0.0
    %633 = vmatpush1.msra.mxu0 0.0
    %634 = vmatprep.subr.mxu0 0.0
    %635 = vmatpush1.msra.mxu0 0.0
    %636 = vmatprep.subr.mxu0 0.0
    %637 = vmatpush1.msra.mxu0 0.0
    %638 = vmatprep.subr.mxu0 0.0
    %639 = vmatpush1.msra.mxu0 0.0
    %640 = vmatprep.subr.mxu0 0.0
    %641 = vmatpush1.msra.mxu0 0.0
    %642 = vmatprep.subr.mxu0 0.0
    %643 = vmatpush1.msra.mxu0 0.0
    %644 = vmatprep.subr.mxu0 0.0
    %645 = vmatpush1.msra.mxu0 0.0
    %646 = vmatprep.subr.mxu0 0.0
    %647 = vmatpush1.msra.mxu0 0.0
    %648 = vmatprep.subr.mxu0 0.0
    %649 = vmatpush1.msra.mxu0 0.0
    %650 = vmatprep.subr.mxu0 0.0
    %651 = vmatpush1.msra.mxu0 0.0
    %652 = vmatprep.subr.mxu0 0.0
    %653 = vmatpush1.msra.mxu0 0.0
    %654 = vmatprep.subr.mxu0 0.0
    %655 = vmatpush1.msra.mxu0 0.0
    %656 = vmatprep.subr.mxu0 0.0
    %657 = vmatpush1.msra.mxu0 0.0
    %658 = vmatprep.subr.mxu0 0.0
    %659 = vmatpush1.msra.mxu0 0.0
    %660 = vmatprep.subr.mxu0 0.0
    %661 = vmatpush1.msra.mxu0 0.0
    %662 = vmatprep.subr.mxu0 0.0
    %663 = vmatpush1.msra.mxu0 0.0
    %664 = vmatprep.subr.mxu0 0.0
    %665 = vmatpush1.msra.mxu0 0.0
    %666 = vmatprep.subr.mxu0 0.0
    %667 = vmatpush1.msra.mxu0 0.0
    %668 = vmatprep.subr.mxu0 0.0
    %669 = vmatpush1.msra.mxu0 0.0
    %670 = vmatprep.subr.mxu0 0.0
    %671 = vmatpush1.msra.mxu0 0.0
    %672 = vmatprep.subr.mxu0 0.0
    %673 = vmatpush1.msra.mxu0 0.0
    %674 = vmatprep.mubr.f32.mxu0 0.0
    %675 = vmatmul.mubr.f32.gmra.mrb[0].mxu0 %v608
    %v676 = vpop.f32.mrb[0].mxu0
    %v677 = vadd.f32 0.0, %v676
    %v678 = vpop.f32.mrb[0].mxu0
    %679 = vdwg.mxu0
    %v680 = vadd.f32 %v594, %v677
    %v681 = vld [vmem:[%s1 + $0x58] sm:$0xff]
    %683 = vset.pattern.permute.xlu0 0
    %684 = vperm.xlu0 %683, %v681
    %v685 = vpop.permute.xlu0 %684
    %v687 = vadd.f32 %v680, %v685
    %v688 = vmax.f32 %v687, 0.0
    %v689 = vld [vmem:[%s1 + $0x60] sm:$0xff]
    %v690 = vld [vmem:[%s1 + $0x68] sm:$0xff]
    %692 = vset.pattern.permute.xlu0 0
    %693 = vperm.xlu0 %692, %v690
    %v694 = vpop.permute.xlu0 %693
    %v697 = vsel %vm34, %v689, 0
    %699 = vmatprep.subr.mxu0 0.0
    %700 = vmatpush1.msra.mxu0 %v688
    %701 = vmatprep.subr.mxu0 0.0
    %702 = vmatpush1.msra.mxu0 0.0
    %703 = vmatprep.subr.mxu0 0.0
    %704 = vmatpush1.msra.mxu0 0.0
    %705 = vmatprep.subr.mxu0 0.0
    %706 = vmatpush1.msra.mxu0 0.0
    %707 = vmatprep.subr.mxu0 0.0
    %708 = vmatpush1.msra.mxu0 0.0
    %709 = vmatprep.subr.mxu0 0.0
    %710 = vmatpush1.msra.mxu0 0.0
    %711 = vmatprep.subr.mxu0 0.0
    %712 = vmatpush1.msra.mxu0 0.0
    %713 = vmatprep.subr.mxu0 0.0
    %714 = vmatpush1.msra.mxu0 0.0
    %715 = vmatprep.subr.mxu0 0.0
    %716 = vmatpush1.msra.mxu0 0.0
    %717 = vmatprep.subr.mxu0 0.0
    %718 = vmatpush1.msra.mxu0 0.0
    %719 = vmatprep.subr.mxu0 0.0
    %720 = vmatpush1.msra.mxu0 0.0
    %721 = vmatprep.subr.mxu0 0.0
    %722 = vmatpush1.msra.mxu0 0.0
    %723 = vmatprep.subr.mxu0 0.0
    %724 = vmatpush1.msra.mxu0 0.0
    %725 = vmatprep.subr.mxu0 0.0
    %726 = vmatpush1.msra.mxu0 0.0
    %727 = vmatprep.subr.mxu0 0.0
    %728 = vmatpush1.msra.mxu0 0.0
    %729 = vmatprep.subr.mxu0 0.0
    %730 = vmatpush1.msra.mxu0 0.0
    %731 = vmatprep.subr.mxu0 0.0
    %732 = vmatpush1.msra.mxu0 0.0
    %733 = vmatprep.subr.mxu0 0.0
    %734 = vmatpush1.msra.mxu0 0.0
    %735 = vmatprep.subr.mxu0 0.0
    %736 = vmatpush1.msra.mxu0 0.0
    %737 = vmatprep.subr.mxu0 0.0
    %738 = vmatpush1.msra.mxu0 0.0
    %739 = vmatprep.subr.mxu0 0.0
    %740 = vmatpush1.msra.mxu0 0.0
    %741 = vmatprep.subr.mxu0 0.0
    %742 = vmatpush1.msra.mxu0 0.0
    %743 = vmatprep.subr.mxu0 0.0
    %744 = vmatpush1.msra.mxu0 0.0
    %745 = vmatprep.subr.mxu0 0.0
    %746 = vmatpush1.msra.mxu0 0.0
    %747 = vmatprep.subr.mxu0 0.0
    %748 = vmatpush1.msra.mxu0 0.0
    %749 = vmatprep.subr.mxu0 0.0
    %750 = vmatpush1.msra.mxu0 0.0
    %751 = vmatprep.subr.mxu0 0.0
    %752 = vmatpush1.msra.mxu0 0.0
    %753 = vmatprep.subr.mxu0 0.0
    %754 = vmatpush1.msra.mxu0 0.0
    %755 = vmatprep.subr.mxu0 0.0
    %756 = vmatpush1.msra.mxu0 0.0
    %757 = vmatprep.subr.mxu0 0.0
    %758 = vmatpush1.msra.mxu0 0.0
    %759 = vmatprep.subr.mxu0 0.0
    %760 = vmatpush1.msra.mxu0 0.0
    %761 = vmatprep.subr.mxu0 0.0
    %762 = vmatpush1.msra.mxu0 0.0
    %763 = vmatprep.mubr.f32.mxu0 0.0
    %764 = vmatmul.mubr.f32.gmra.mrb[0].mxu0 %v697
    %v765 = vpop.f32.mrb[0].mxu0
    %v766 = vadd.f32 %v694, %v765
    %v767 = vpop.f32.mrb[0].mxu0
    %768 = vdwg.mxu0
    %v769 = vadd.f32 %v438, %v766
    %771 = vrot.lane.b32.xlu0 %v769, 4
    %v772 = vpop.permute.xlu0 %771
    %vm774 = vcmask 31744
    %v775 = vsel %vm774, 0.0, %v772
    %vm776 = vcmp.ge.s32.totalorder %v25, 4
    %v777 = vsel %vm776, 1, 0
    %vm778 = vcmp.eq.s32.totalorder %v777, 1
    %v779 = vsel %vm778, %v775, 0.0
    %v780 = vld [vmem:[%s1 + $0x70] sm:$0xff]
    %v781 = vld [vmem:[%s1 + $0x78] sm:$0xff]
    %v783 = vsel %vm34, %v781, 0
    %785 = vmatprep.subr.mxu0 0.0
    %786 = vmatpush1.msra.mxu0 %v769
    %787 = vmatprep.subr.mxu0 0.0
    %788 = vmatpush1.msra.mxu0 0.0
    %789 = vmatprep.subr.mxu0 0.0
    %790 = vmatpush1.msra.mxu0 0.0
    %791 = vmatprep.subr.mxu0 0.0
    %792 = vmatpush1.msra.mxu0 0.0
    %793 = vmatprep.subr.mxu0 0.0
    %794 = vmatpush1.msra.mxu0 0.0
    %795 = vmatprep.subr.mxu0 0.0
    %796 = vmatpush1.msra.mxu0 0.0
    %797 = vmatprep.subr.mxu0 0.0
    %798 = vmatpush1.msra.mxu0 0.0
    %799 = vmatprep.subr.mxu0 0.0
    %800 = vmatpush1.msra.mxu0 0.0
    %801 = vmatprep.subr.mxu0 0.0
    %802 = vmatpush1.msra.mxu0 0.0
    %803 = vmatprep.subr.mxu0 0.0
    %804 = vmatpush1.msra.mxu0 0.0
    %805 = vmatprep.subr.mxu0 0.0
    %806 = vmatpush1.msra.mxu0 0.0
    %807 = vmatprep.subr.mxu0 0.0
    %808 = vmatpush1.msra.mxu0 0.0
    %809 = vmatprep.subr.mxu0 0.0
    %810 = vmatpush1.msra.mxu0 0.0
    %811 = vmatprep.subr.mxu0 0.0
    %812 = vmatpush1.msra.mxu0 0.0
    %813 = vmatprep.subr.mxu0 0.0
    %814 = vmatpush1.msra.mxu0 0.0
    %815 = vmatprep.subr.mxu0 0.0
    %816 = vmatpush1.msra.mxu0 0.0
    %817 = vmatprep.subr.mxu0 0.0
    %818 = vmatpush1.msra.mxu0 0.0
    %819 = vmatprep.subr.mxu0 0.0
    %820 = vmatpush1.msra.mxu0 0.0
    %821 = vmatprep.subr.mxu0 0.0
    %822 = vmatpush1.msra.mxu0 0.0
    %823 = vmatprep.subr.mxu0 0.0
    %824 = vmatpush1.msra.mxu0 0.0
    %825 = vmatprep.subr.mxu0 0.0
    %826 = vmatpush1.msra.mxu0 0.0
    %827 = vmatprep.subr.mxu0 0.0
    %828 = vmatpush1.msra.mxu0 0.0
    %829 = vmatprep.subr.mxu0 0.0
    %830 = vmatpush1.msra.mxu0 0.0
    %831 = vmatprep.subr.mxu0 0.0
    %832 = vmatpush1.msra.mxu0 0.0
    %833 = vmatprep.subr.mxu0 0.0
    %834 = vmatpush1.msra.mxu0 0.0
    %835 = vmatprep.subr.mxu0 0.0
    %836 = vmatpush1.msra.mxu0 0.0
    %837 = vmatprep.subr.mxu0 0.0
    %838 = vmatpush1.msra.mxu0 0.0
    %839 = vmatprep.subr.mxu0 0.0
    %840 = vmatpush1.msra.mxu0 0.0
    %841 = vmatprep.subr.mxu0 0.0
    %842 = vmatpush1.msra.mxu0 0.0
    %843 = vmatprep.subr.mxu0 0.0
    %844 = vmatpush1.msra.mxu0 0.0
    %845 = vmatprep.subr.mxu0 0.0
    %846 = vmatpush1.msra.mxu0 0.0
    %847 = vmatprep.subr.mxu0 0.0
    %848 = vmatpush1.msra.mxu0 0.0
    %849 = vmatprep.mubr.f32.mxu0 0.0
    %850 = vmatmul.mubr.f32.gmra.mrb[0].mxu0 %v783
    %v851 = vpop.f32.mrb[0].mxu0
    %v852 = vadd.f32 0.0, %v851
    %v853 = vpop.f32.mrb[0].mxu0
    %854 = vdwg.mxu0
    %v856 = vsel %vm34, %v780, 0
    %858 = vmatprep.subr.mxu0 0.0
    %859 = vmatpush1.msra.mxu0 %v779
    %860 = vmatprep.subr.mxu0 0.0
    %861 = vmatpush1.msra.mxu0 0.0
    %862 = vmatprep.subr.mxu0 0.0
    %863 = vmatpush1.msra.mxu0 0.0
    %864 = vmatprep.subr.mxu0 0.0
    %865 = vmatpush1.msra.mxu0 0.0
    %866 = vmatprep.subr.mxu0 0.0
    %867 = vmatpush1.msra.mxu0 0.0
    %868 = vmatprep.subr.mxu0 0.0
    %869 = vmatpush1.msra.mxu0 0.0
    %870 = vmatprep.subr.mxu0 0.0
    %871 = vmatpush1.msra.mxu0 0.0
    %872 = vmatprep.subr.mxu0 0.0
    %873 = vmatpush1.msra.mxu0 0.0
    %874 = vmatprep.subr.mxu0 0.0
    %875 = vmatpush1.msra.mxu0 0.0
    %876 = vmatprep.subr.mxu0 0.0
    %877 = vmatpush1.msra.mxu0 0.0
    %878 = vmatprep.subr.mxu0 0.0
    %879 = vmatpush1.msra.mxu0 0.0
    %880 = vmatprep.subr.mxu0 0.0
    %881 = vmatpush1.msra.mxu0 0.0
    %882 = vmatprep.subr.mxu0 0.0
    %883 = vmatpush1.msra.mxu0 0.0
    %884 = vmatprep.subr.mxu0 0.0
    %885 = vmatpush1.msra.mxu0 0.0
    %886 = vmatprep.subr.mxu0 0.0
    %887 = vmatpush1.msra.mxu0 0.0
    %888 = vmatprep.subr.mxu0 0.0
    %889 = vmatpush1.msra.mxu0 0.0
    %890 = vmatprep.subr.mxu0 0.0
    %891 = vmatpush1.msra.mxu0 0.0
    %892 = vmatprep.subr.mxu0 0.0
    %893 = vmatpush1.msra.mxu0 0.0
    %894 = vmatprep.subr.mxu0 0.0
    %895 = vmatpush1.msra.mxu0 0.0
    %896 = vmatprep.subr.mxu0 0.0
    %897 = vmatpush1.msra.mxu0 0.0
    %898 = vmatprep.subr.mxu0 0.0
    %899 = vmatpush1.msra.mxu0 0.0
    %900 = vmatprep.subr.mxu0 0.0
    %901 = vmatpush1.msra.mxu0 0.0
    %902 = vmatprep.subr.mxu0 0.0
    %903 = vmatpush1.msra.mxu0 0.0
    %904 = vmatprep.subr.mxu0 0.0
    %905 = vmatpush1.msra.mxu0 0.0
    %906 = vmatprep.subr.mxu0 0.0
    %907 = vmatpush1.msra.mxu0 0.0
    %908 = vmatprep.subr.mxu0 0.0
    %909 = vmatpush1.msra.mxu0 0.0
    %910 = vmatprep.subr.mxu0 0.0
    %911 = vmatpush1.msra.mxu0 0.0
    %912 = vmatprep.subr.mxu0 0.0
    %913 = vmatpush1.msra.mxu0 0.0
    %914 = vmatprep.subr.mxu0 0.0
    %915 = vmatpush1.msra.mxu0 0.0
    %916 = vmatprep.subr.mxu0 0.0
    %917 = vmatpush1.msra.mxu0 0.0
    %918 = vmatprep.subr.mxu0 0.0
    %919 = vmatpush1.msra.mxu0 0.0
    %920 = vmatprep.subr.mxu0 0.0
    %921 = vmatpush1.msra.mxu0 0.0
    %922 = vmatprep.mubr.f32.mxu0 0.0
    %923 = vmatmul.mubr.f32.gmra.mrb[0].mxu0 %v856
    %v924 = vpop.f32.mrb[0].mxu0
    %v925 = vadd.f32 %v852, %v924
    %v926 = vpop.f32.mrb[0].mxu0
    %927 = vdwg.mxu0
    %928 = vrot.lane.b32.xlu0 %v769, 124
    %v929 = vpop.permute.xlu0 %928
    %vm931 = vcmask 490496
    %v932 = vsel %vm931, %v929, 0.0
    %vm933 = vcmp.lt.s32.totalorder %v25, 12
    %v934 = vsel %vm933, 1, 0
    %vm935 = vcmp.eq.s32.totalorder %v934, 1
    %v936 = vsel %vm935, %v932, 0.0
    %v937 = vld [vmem:[%s1 + $0x80] sm:$0xff]
    %v939 = vsel %vm34, %v937, 0
    %941 = vmatprep.subr.mxu0 0.0
    %942 = vmatpush1.msra.mxu0 %v936
    %943 = vmatprep.subr.mxu0 0.0
    %944 = vmatpush1.msra.mxu0 0.0
    %945 = vmatprep.subr.mxu0 0.0
    %946 = vmatpush1.msra.mxu0 0.0
    %947 = vmatprep.subr.mxu0 0.0
    %948 = vmatpush1.msra.mxu0 0.0
    %949 = vmatprep.subr.mxu0 0.0
    %950 = vmatpush1.msra.mxu0 0.0
    %951 = vmatprep.subr.mxu0 0.0
    %952 = vmatpush1.msra.mxu0 0.0
    %953 = vmatprep.subr.mxu0 0.0
    %954 = vmatpush1.msra.mxu0 0.0
    %955 = vmatprep.subr.mxu0 0.0
    %956 = vmatpush1.msra.mxu0 0.0
    %957 = vmatprep.subr.mxu0 0.0
    %958 = vmatpush1.msra.mxu0 0.0
    %959 = vmatprep.subr.mxu0 0.0
    %960 = vmatpush1.msra.mxu0 0.0
    %961 = vmatprep.subr.mxu0 0.0
    %962 = vmatpush1.msra.mxu0 0.0
    %963 = vmatprep.subr.mxu0 0.0
    %964 = vmatpush1.msra.mxu0 0.0
    %965 = vmatprep.subr.mxu0 0.0
    %966 = vmatpush1.msra.mxu0 0.0
    %967 = vmatprep.subr.mxu0 0.0
    %968 = vmatpush1.msra.mxu0 0.0
    %969 = vmatprep.subr.mxu0 0.0
    %970 = vmatpush1.msra.mxu0 0.0
    %971 = vmatprep.subr.mxu0 0.0
    %972 = vmatpush1.msra.mxu0 0.0
    %973 = vmatprep.subr.mxu0 0.0
    %974 = vmatpush1.msra.mxu0 0.0
    %975 = vmatprep.subr.mxu0 0.0
    %976 = vmatpush1.msra.mxu0 0.0
    %977 = vmatprep.subr.mxu0 0.0
    %978 = vmatpush1.msra.mxu0 0.0
    %979 = vmatprep.subr.mxu0 0.0
    %980 = vmatpush1.msra.mxu0 0.0
    %981 = vmatprep.subr.mxu0 0.0
    %982 = vmatpush1.msra.mxu0 0.0
    %983 = vmatprep.subr.mxu0 0.0
    %984 = vmatpush1.msra.mxu0 0.0
    %985 = vmatprep.subr.mxu0 0.0
    %986 = vmatpush1.msra.mxu0 0.0
    %987 = vmatprep.subr.mxu0 0.0
    %988 = vmatpush1.msra.mxu0 0.0
    %989 = vmatprep.subr.mxu0 0.0
    %990 = vmatpush1.msra.mxu0 0.0
    %991 = vmatprep.subr.mxu0 0.0
    %992 = vmatpush1.msra.mxu0 0.0
    %993 = vmatprep.subr.mxu0 0.0
    %994 = vmatpush1.msra.mxu0 0.0
    %995 = vmatprep.subr.mxu0 0.0
    %996 = vmatpush1.msra.mxu0 0.0
    %997 = vmatprep.subr.mxu0 0.0
    %998 = vmatpush1.msra.mxu0 0.0
    %999 = vmatprep.subr.mxu0 0.0
    %1000 = vmatpush1.msra.mxu0 0.0
    %1001 = vmatprep.subr.mxu0 0.0
    %1002 = vmatpush1.msra.mxu0 0.0
    %1003 = vmatprep.subr.mxu0 0.0
    %1004 = vmatpush1.msra.mxu0 0.0
    %1005 = vmatprep.mubr.f32.mxu0 0.0
    %1006 = vmatmul.mubr.f32.gmra.mrb[0].mxu0 %v939
    %v1007 = vpop.f32.mrb[0].mxu0
    %v1008 = vadd.f32 0.0, %v1007
    %v1009 = vpop.f32.mrb[0].mxu0
    %1010 = vdwg.mxu0
    %v1011 = vadd.f32 %v925, %v1008
    %v1012 = vld [vmem:[%s1 + $0x88] sm:$0xff]
    %1014 = vset.pattern.permute.xlu0 0
    %1015 = vperm.xlu0 %1014, %v1012
    %v1016 = vpop.permute.xlu0 %1015
    %v1018 = vadd.f32 %v1011, %v1016
    %v1019 = vmax.f32 %v1018, 0.0
    %v1020 = vld [vmem:[%s1 + $0x90] sm:$0xff]
    %v1021 = vld [vmem:[%s1 + $0x98] sm:$0xff]
    %1023 = vset.pattern.permute.xlu0 0
    %1024 = vperm.xlu0 %1023, %v1021
    %v1025 = vpop.permute.xlu0 %1024
    %v1028 = vsel %vm34, %v1020, 0
    %1030 = vmatprep.subr.mxu0 0.0
    %1031 = vmatpush1.msra.mxu0 %v1019
    %1032 = vmatprep.subr.mxu0 0.0
    %1033 = vmatpush1.msra.mxu0 0.0
    %1034 = vmatprep.subr.mxu0 0.0
    %1035 = vmatpush1.msra.mxu0 0.0
    %1036 = vmatprep.subr.mxu0 0.0
    %1037 = vmatpush1.msra.mxu0 0.0
    %1038 = vmatprep.subr.mxu0 0.0
    %1039 = vmatpush1.msra.mxu0 0.0
    %1040 = vmatprep.subr.mxu0 0.0
    %1041 = vmatpush1.msra.mxu0 0.0
    %1042 = vmatprep.subr.mxu0 0.0
    %1043 = vmatpush1.msra.mxu0 0.0
    %1044 = vmatprep.subr.mxu0 0.0
    %1045 = vmatpush1.msra.mxu0 0.0
    %1046 = vmatprep.subr.mxu0 0.0
    %1047 = vmatpush1.msra.mxu0 0.0
    %1048 = vmatprep.subr.mxu0 0.0
    %1049 = vmatpush1.msra.mxu0 0.0
    %1050 = vmatprep.subr.mxu0 0.0
    %1051 = vmatpush1.msra.mxu0 0.0
    %1052 = vmatprep.subr.mxu0 0.0
    %1053 = vmatpush1.msra.mxu0 0.0
    %1054 = vmatprep.subr.mxu0 0.0
    %1055 = vmatpush1.msra.mxu0 0.0
    %1056 = vmatprep.subr.mxu0 0.0
    %1057 = vmatpush1.msra.mxu0 0.0
    %1058 = vmatprep.subr.mxu0 0.0
    %1059 = vmatpush1.msra.mxu0 0.0
    %1060 = vmatprep.subr.mxu0 0.0
    %1061 = vmatpush1.msra.mxu0 0.0
    %1062 = vmatprep.subr.mxu0 0.0
    %1063 = vmatpush1.msra.mxu0 0.0
    %1064 = vmatprep.subr.mxu0 0.0
    %1065 = vmatpush1.msra.mxu0 0.0
    %1066 = vmatprep.subr.mxu0 0.0
    %1067 = vmatpush1.msra.mxu0 0.0
    %1068 = vmatprep.subr.mxu0 0.0
    %1069 = vmatpush1.msra.mxu0 0.0
    %1070 = vmatprep.subr.mxu0 0.0
    %1071 = vmatpush1.msra.mxu0 0.0
    %1072 = vmatprep.subr.mxu0 0.0
    %1073 = vmatpush1.msra.mxu0 0.0
    %1074 = vmatprep.subr.mxu0 0.0
    %1075 = vmatpush1.msra.mxu0 0.0
    %1076 = vmatprep.subr.mxu0 0.0
    %1077 = vmatpush1.msra.mxu0 0.0
    %1078 = vmatprep.subr.mxu0 0.0
    %1079 = vmatpush1.msra.mxu0 0.0
    %1080 = vmatprep.subr.mxu0 0.0
    %1081 = vmatpush1.msra.mxu0 0.0
    %1082 = vmatprep.subr.mxu0 0.0
    %1083 = vmatpush1.msra.mxu0 0.0
    %1084 = vmatprep.subr.mxu0 0.0
    %1085 = vmatpush1.msra.mxu0 0.0
    %1086 = vmatprep.subr.mxu0 0.0
    %1087 = vmatpush1.msra.mxu0 0.0
    %1088 = vmatprep.subr.mxu0 0.0
    %1089 = vmatpush1.msra.mxu0 0.0
    %1090 = vmatprep.subr.mxu0 0.0
    %1091 = vmatpush1.msra.mxu0 0.0
    %1092 = vmatprep.subr.mxu0 0.0
    %1093 = vmatpush1.msra.mxu0 0.0
    %1094 = vmatprep.mubr.f32.mxu0 0.0
    %1095 = vmatmul.mubr.f32.gmra.mrb[0].mxu0 %v1028
    %v1096 = vpop.f32.mrb[0].mxu0
    %v1097 = vadd.f32 %v1025, %v1096
    %v1098 = vpop.f32.mrb[0].mxu0
    %1099 = vdwg.mxu0
    %v1100 = vadd.f32 %v769, %v1097
    %v1101 = vld [vmem:[%s1 + $0xa0] sm:$0xf]
    %v1102 = vld [vmem:[%s1 + $0xa4] sm:$0xf]
    %1104 = vset.pattern.permute.xlu0 0
    %1105 = vperm.xlu0 %1104, %v1102
    %v1106 = vpop.permute.xlu0 %1105
    %v1109 = vsel %vm34, %v1101, 0
    %1111 = vmatprep.subr.mxu0 0.0
    %1112 = vmatpush1.msra.mxu0 %v1100
    %1113 = vmatprep.subr.mxu0 0.0
    %1114 = vmatpush1.msra.mxu0 0.0
    %1115 = vmatprep.subr.mxu0 0.0
    %1116 = vmatpush1.msra.mxu0 0.0
    %1117 = vmatprep.subr.mxu0 0.0
    %1118 = vmatpush1.msra.mxu0 0.0
    %1119 = vmatprep.subr.mxu0 0.0
    %1120 = vmatpush1.msra.mxu0 0.0
    %1121 = vmatprep.subr.mxu0 0.0
    %1122 = vmatpush1.msra.mxu0 0.0
    %1123 = vmatprep.subr.mxu0 0.0
    %1124 = vmatpush1.msra.mxu0 0.0
    %1125 = vmatprep.subr.mxu0 0.0
    %1126 = vmatpush1.msra.mxu0 0.0
    %1127 = vmatprep.subr.mxu0 0.0
    %1128 = vmatpush1.msra.mxu0 0.0
    %1129 = vmatprep.subr.mxu0 0.0
    %1130 = vmatpush1.msra.mxu0 0.0
    %1131 = vmatprep.subr.mxu0 0.0
    %1132 = vmatpush1.msra.mxu0 0.0
    %1133 = vmatprep.subr.mxu0 0.0
    %1134 = vmatpush1.msra.mxu0 0.0
    %1135 = vmatprep.subr.mxu0 0.0
    %1136 = vmatpush1.msra.mxu0 0.0
    %1137 = vmatprep.subr.mxu0 0.0
    %1138 = vmatpush1.msra.mxu0 0.0
    %1139 = vmatprep.subr.mxu0 0.0
    %1140 = vmatpush1.msra.mxu0 0.0
    %1141 = vmatprep.subr.mxu0 0.0
    %1142 = vmatpush1.msra.mxu0 0.0
    %1143 = vmatprep.subr.mxu0 0.0
    %1144 = vmatpush1.msra.mxu0 0.0
    %1145 = vmatprep.subr.mxu0 0.0
    %1146 = vmatpush1.msra.mxu0 0.0
    %1147 = vmatprep.subr.mxu0 0.0
    %1148 = vmatpush1.msra.mxu0 0.0
    %1149 = vmatprep.subr.mxu0 0.0
    %1150 = vmatpush1.msra.mxu0 0.0
    %1151 = vmatprep.subr.mxu0 0.0
    %1152 = vmatpush1.msra.mxu0 0.0
    %1153 = vmatprep.subr.mxu0 0.0
    %1154 = vmatpush1.msra.mxu0 0.0
    %1155 = vmatprep.subr.mxu0 0.0
    %1156 = vmatpush1.msra.mxu0 0.0
    %1157 = vmatprep.subr.mxu0 0.0
    %1158 = vmatpush1.msra.mxu0 0.0
    %1159 = vmatprep.subr.mxu0 0.0
    %1160 = vmatpush1.msra.mxu0 0.0
    %1161 = vmatprep.subr.mxu0 0.0
    %1162 = vmatpush1.msra.mxu0 0.0
    %1163 = vmatprep.subr.mxu0 0.0
    %1164 = vmatpush1.msra.mxu0 0.0
    %1165 = vmatprep.subr.mxu0 0.0
    %1166 = vmatpush1.msra.mxu0 0.0
    %1167 = vmatprep.subr.mxu0 0.0
    %1168 = vmatpush1.msra.mxu0 0.0
    %1169 = vmatprep.subr.mxu0 0.0
    %1170 = vmatpush1.msra.mxu0 0.0
    %1171 = vmatprep.subr.mxu0 0.0
    %1172 = vmatpush1.msra.mxu0 0.0
    %1173 = vmatprep.subr.mxu0 0.0
    %1174 = vmatpush1.msra.mxu0 0.0
    %1175 = vmatprep.mubr.f32.mxu0 0.0
    %1176 = vmatmul.mubr.f32.gmra.mrb[0].mxu0 %v1109
    %v1177 = vpop.f32.mrb[0].mxu0
    %v1178 = vadd.f32 %v1106, %v1177
    %v1179 = vpop.f32.mrb[0].mxu0
    %1180 = vdwg.mxu0
    %1182 = vrot.lane.b32.xlu0 %v1178, 112
    %v1183 = vpop.permute.xlu0 %1182
    %v1185 = vadd.f32 %v1178, %v1183
    %1186 = vrot.lane.b32.xlu0 %v1178, 96
    %v1187 = vpop.permute.xlu0 %1186
    %v1189 = vadd.f32 %v1185, %v1187
    %1190 = vrot.lane.b32.xlu0 %v1178, 80
    %v1191 = vpop.permute.xlu0 %1190
    %v1193 = vadd.f32 %v1189, %v1191
    %v1194 = vmul.f32 %v1193, 0.25
    %vm1195 = vcmask 125952
    %1196 = vst.msk [vmem:[#allocation2] sm:$0xf] %vm1195, %v1194
    %v1197 = vsel %vm1195, %v1194, -inf
    %v1198 = vrot.slane %v1197, 4
    %v1199 = vmax.f32 %v1197, %v1198
    %v1200 = vrot.slane %v1199, 2
    %v1201 = vmax.f32 %v1199, %v1200
    %v1202 = vrot.slane %v1201, 1
    %v1203 = vmax.f32 %v1201, %v1202
    %v1204 = vsub.f32 %v1194, %v1203
    %v1205 = vmul.f32 %v1204, 1.442695
    %v1206 = vpow.pop %v1205
    %v1207 = vsel %vm1195, %v1206, 0.0
    %v1208 = vrot.slane %v1207, 4
    %v1209 = vadd.f32 %v1207, %v1208
    %v1210 = vrot.slane %v1209, 2
    %v1211 = vadd.f32 %v1209, %v1210
    %v1212 = vrot.slane %v1211, 1
    %v1213 = vadd.f32 %v1211, %v1212
    %v1214 = vrcp.pop %v1213
    %v1215 = vmul.f32 %v1206, %v1214
    %v1216 = vld [vmem:[%s1 + $0xa8] sm:$0xff]
    %v1217 = vld [vmem:[%s1 + $0xb0] sm:$0xff]
    %1219 = vset.pattern.permute.xlu0 0
    %1220 = vperm.xlu0 %1219, %v1217
    %v1221 = vpop.permute.xlu0 %1220
    %v1224 = vsel %vm774, %v1216, 0
    %vm1226 = vcmask 1043456
    %v1228 = vsel %vm1226, %v1215, 0
    %1230 = vmatprep.subr.mxu0 0.0
    %1231 = vmatpush1.msra.mxu0 %v1228
    %1232 = vmatprep.subr.mxu0 0.0
    %1233 = vmatpush1.msra.mxu0 0.0
    %1234 = vmatprep.subr.mxu0 0.0
    %1235 = vmatpush1.msra.mxu0 0.0
    %1236 = vmatprep.subr.mxu0 0.0
    %1237 = vmatpush1.msra.mxu0 0.0
    %1238 = vmatprep.subr.mxu0 0.0
    %1239 = vmatpush1.msra.mxu0 0.0
    %1240 = vmatprep.subr.mxu0 0.0
    %1241 = vmatpush1.msra.mxu0 0.0
    %1242 = vmatprep.subr.mxu0 0.0
    %1243 = vmatpush1.msra.mxu0 0.0
    %1244 = vmatprep.subr.mxu0 0.0
    %1245 = vmatpush1.msra.mxu0 0.0
    %1246 = vmatprep.subr.mxu0 0.0
    %1247 = vmatpush1.msra.mxu0 0.0
    %1248 = vmatprep.subr.mxu0 0.0
    %1249 = vmatpush1.msra.mxu0 0.0
    %1250 = vmatprep.subr.mxu0 0.0
    %1251 = vmatpush1.msra.mxu0 0.0
    %1252 = vmatprep.subr.mxu0 0.0
    %1253 = vmatpush1.msra.mxu0 0.0
    %1254 = vmatprep.subr.mxu0 0.0
    %1255 = vmatpush1.msra.mxu0 0.0
    %1256 = vmatprep.subr.mxu0 0.0
    %1257 = vmatpush1.msra.mxu0 0.0
    %1258 = vmatprep.subr.mxu0 0.0
    %1259 = vmatpush1.msra.mxu0 0.0
    %1260 = vmatprep.subr.mxu0 0.0
    %1261 = vmatpush1.msra.mxu0 0.0
    %1262 = vmatprep.subr.mxu0 0.0
    %1263 = vmatpush1.msra.mxu0 0.0
    %1264 = vmatprep.subr.mxu0 0.0
    %1265 = vmatpush1.msra.mxu0 0.0
    %1266 = vmatprep.subr.mxu0 0.0
    %1267 = vmatpush1.msra.mxu0 0.0
    %1268 = vmatprep.subr.mxu0 0.0
    %1269 = vmatpush1.msra.mxu0 0.0
    %1270 = vmatprep.subr.mxu0 0.0
    %1271 = vmatpush1.msra.mxu0 0.0
    %1272 = vmatprep.subr.mxu0 0.0
    %1273 = vmatpush1.msra.mxu0 0.0
    %1274 = vmatprep.subr.mxu0 0.0
    %1275 = vmatpush1.msra.mxu0 0.0
    %1276 = vmatprep.subr.mxu0 0.0
    %1277 = vmatpush1.msra.mxu0 0.0
    %1278 = vmatprep.subr.mxu0 0.0
    %1279 = vmatpush1.msra.mxu0 0.0
    %1280 = vmatprep.subr.mxu0 0.0
    %1281 = vmatpush1.msra.mxu0 0.0
    %1282 = vmatprep.subr.mxu0 0.0
    %1283 = vmatpush1.msra.mxu0 0.0
    %1284 = vmatprep.subr.mxu0 0.0
    %1285 = vmatpush1.msra.mxu0 0.0
    %1286 = vmatprep.subr.mxu0 0.0
    %1287 = vmatpush1.msra.mxu0 0.0
    %1288 = vmatprep.subr.mxu0 0.0
    %1289 = vmatpush1.msra.mxu0 0.0
    %1290 = vmatprep.subr.mxu0 0.0
    %1291 = vmatpush1.msra.mxu0 0.0
    %1292 = vmatprep.subr.mxu0 0.0
    %1293 = vmatpush1.msra.mxu0 0.0
    %1294 = vmatprep.mubr.f32.mxu0 0.0
    %1295 = vmatmul.mubr.f32.gmra.mrb[0].mxu0 %v1224
    %v1296 = vpop.f32.mrb[0].mxu0
    %v1297 = vadd.f32 %v1221, %v1296
    %v1298 = vpop.f32.mrb[0].mxu0
    %1299 = vdwg.mxu0
    %1301 = vrot.lane.b32.xlu0 %v1297, 1
    %v1302 = vpop.permute.xlu0 %1301
    %v1304 = vsel %vm112, 0.0, %v1302
    %vm1305 = vcmp.ge.s32.totalorder %v13, 1
    %v1306 = vsel %vm1305, 1, 0
    %vm1307 = vcmp.eq.s32.totalorder %v1306, 1
    %v1308 = vsel %vm1307, %v1304, 0.0
    %v1309 = vld [vmem:[%s1 + $0xb8] sm:$0xff]
    %v1310 = vld [vmem:[%s1 + $0xc0] sm:$0xff]
    %v1312 = vsel %vm34, %v1310, 0
    %1314 = vmatprep.subr.mxu0 0.0
    %1315 = vmatpush1.msra.mxu0 %v1297
    %1316 = vmatprep.subr.mxu0 0.0
    %1317 = vmatpush1.msra.mxu0 0.0
    %1318 = vmatprep.subr.mxu0 0.0
    %1319 = vmatpush1.msra.mxu0 0.0
    %1320 = vmatprep.subr.mxu0 0.0
    %1321 = vmatpush1.msra.mxu0 0.0
    %1322 = vmatprep.subr.mxu0 0.0
    %1323 = vmatpush1.msra.mxu0 0.0
    %1324 = vmatprep.subr.mxu0 0.0
    %1325 = vmatpush1.msra.mxu0 0.0
    %1326 = vmatprep.subr.mxu0 0.0
    %1327 = vmatpush1.msra.mxu0 0.0
    %1328 = vmatprep.subr.mxu0 0.0
    %1329 = vmatpush1.msra.mxu0 0.0
    %1330 = vmatprep.subr.mxu0 0.0
    %1331 = vmatpush1.msra.mxu0 0.0
    %1332 = vmatprep.subr.mxu0 0.0
    %1333 = vmatpush1.msra.mxu0 0.0
    %1334 = vmatprep.subr.mxu0 0.0
    %1335 = vmatpush1.msra.mxu0 0.0
    %1336 = vmatprep.subr.mxu0 0.0
    %1337 = vmatpush1.msra.mxu0 0.0
    %1338 = vmatprep.subr.mxu0 0.0
    %1339 = vmatpush1.msra.mxu0 0.0
    %1340 = vmatprep.subr.mxu0 0.0
    %1341 = vmatpush1.msra.mxu0 0.0
    %1342 = vmatprep.subr.mxu0 0.0
    %1343 = vmatpush1.msra.mxu0 0.0
    %1344 = vmatprep.subr.mxu0 0.0
    %1345 = vmatpush1.msra.mxu0 0.0
    %1346 = vmatprep.subr.mxu0 0.0
    %1347 = vmatpush1.msra.mxu0 0.0
    %1348 = vmatprep.subr.mxu0 0.0
    %1349 = vmatpush1.msra.mxu0 0.0
    %1350 = vmatprep.subr.mxu0 0.0
    %1351 = vmatpush1.msra.mxu0 0.0
    %1352 = vmatprep.subr.mxu0 0.0
    %1353 = vmatpush1.msra.mxu0 0.0
    %1354 = vmatprep.subr.mxu0 0.0
    %1355 = vmatpush1.msra.mxu0 0.0
    %1356 = vmatprep.subr.mxu0 0.0
    %1357 = vmatpush1.msra.mxu0 0.0
    %1358 = vmatprep.subr.mxu0 0.0
    %1359 = vmatpush1.msra.mxu0 0.0
    %1360 = vmatprep.subr.mxu0 0.0
    %1361 = vmatpush1.msra.mxu0 0.0
    %1362 = vmatprep.subr.mxu0 0.0
    %1363 = vmatpush1.msra.mxu0 0.0
    %1364 = vmatprep.subr.mxu0 0.0
    %1365 = vmatpush1.msra.mxu0 0.0
    %1366 = vmatprep.subr.mxu0 0.0
    %1367 = vmatpush1.msra.mxu0 0.0
    %1368 = vmatprep.subr.mxu0 0.0
    %1369 = vmatpush1.msra.mxu0 0.0
    %1370 = vmatprep.subr.mxu0 0.0
    %1371 = vmatpush1.msra.mxu0 0.0
    %1372 = vmatprep.subr.mxu0 0.0
    %1373 = vmatpush1.msra.mxu0 0.0
    %1374 = vmatprep.subr.mxu0 0.0
    %1375 = vmatpush1.msra.mxu0 0.0
    %1376 = vmatprep.subr.mxu0 0.0
    %1377 = vmatpush1.msra.mxu0 0.0
    %1378 = vmatprep.mubr.f32.mxu0 0.0
    %1379 = vmatmul.mubr.f32.gmra.mrb[0].mxu0 %v1312
    %v1380 = vpop.f32.mrb[0].mxu0
    %v1381 = vadd.f32 0.0, %v1380
    %v1382 = vpop.f32.mrb[0].mxu0
    %1383 = vdwg.mxu0
    %v1385 = vsel %vm34, %v1309, 0
    %1387 = vmatprep.subr.mxu0 0.0
    %1388 = vmatpush1.msra.mxu0 %v1308
    %1389 = vmatprep.subr.mxu0 0.0
    %1390 = vmatpush1.msra.mxu0 0.0
    %1391 = vmatprep.subr.mxu0 0.0
    %1392 = vmatpush1.msra.mxu0 0.0
    %1393 = vmatprep.subr.mxu0 0.0
    %1394 = vmatpush1.msra.mxu0 0.0
    %1395 = vmatprep.subr.mxu0 0.0
    %1396 = vmatpush1.msra.mxu0 0.0
    %1397 = vmatprep.subr.mxu0 0.0
    %1398 = vmatpush1.msra.mxu0 0.0
    %1399 = vmatprep.subr.mxu0 0.0
    %1400 = vmatpush1.msra.mxu0 0.0
    %1401 = vmatprep.subr.mxu0 0.0
    %1402 = vmatpush1.msra.mxu0 0.0
    %1403 = vmatprep.subr.mxu0 0.0
    %1404 = vmatpush1.msra.mxu0 0.0
    %1405 = vmatprep.subr.mxu0 0.0
    %1406 = vmatpush1.msra.mxu0 0.0
    %1407 = vmatprep.subr.mxu0 0.0
    %1408 = vmatpush1.msra.mxu0 0.0
    %1409 = vmatprep.subr.mxu0 0.0
    %1410 = vmatpush1.msra.mxu0 0.0
    %1411 = vmatprep.subr.mxu0 0.0
    %1412 = vmatpush1.msra.mxu0 0.0
    %1413 = vmatprep.subr.mxu0 0.0
    %1414 = vmatpush1.msra.mxu0 0.0
    %1415 = vmatprep.subr.mxu0 0.0
    %1416 = vmatpush1.msra.mxu0 0.0
    %1417 = vmatprep.subr.mxu0 0.0
    %1418 = vmatpush1.msra.mxu0 0.0
    %1419 = vmatprep.subr.mxu0 0.0
    %1420 = vmatpush1.msra.mxu0 0.0
    %1421 = vmatprep.subr.mxu0 0.0
    %1422 = vmatpush1.msra.mxu0 0.0
    %1423 = vmatprep.subr.mxu0 0.0
    %1424 = vmatpush1.msra.mxu0 0.0
    %1425 = vmatprep.subr.mxu0 0.0
    %1426 = vmatpush1.msra.mxu0 0.0
    %1427 = vmatprep.subr.mxu0 0.0
    %1428 = vmatpush1.msra.mxu0 0.0
    %1429 = vmatprep.subr.mxu0 0.0
    %1430 = vmatpush1.msra.mxu0 0.0
    %1431 = vmatprep.subr.mxu0 0.0
    %1432 = vmatpush1.msra.mxu0 0.0
    %1433 = vmatprep.subr.mxu0 0.0
    %1434 = vmatpush1.msra.mxu0 0.0
    %1435 = vmatprep.subr.mxu0 0.0
    %1436 = vmatpush1.msra.mxu0 0.0
    %1437 = vmatprep.subr.mxu0 0.0
    %1438 = vmatpush1.msra.mxu0 0.0
    %1439 = vmatprep.subr.mxu0 0.0
    %1440 = vmatpush1.msra.mxu0 0.0
    %1441 = vmatprep.subr.mxu0 0.0
    %1442 = vmatpush1.msra.mxu0 0.0
    %1443 = vmatprep.subr.mxu0 0.0
    %1444 = vmatpush1.msra.mxu0 0.0
    %1445 = vmatprep.subr.mxu0 0.0
    %1446 = vmatpush1.msra.mxu0 0.0
    %1447 = vmatprep.subr.mxu0 0.0
    %1448 = vmatpush1.msra.mxu0 0.0
    %1449 = vmatprep.subr.mxu0 0.0
    %1450 = vmatpush1.msra.mxu0 0.0
    %1451 = vmatprep.mubr.f32.mxu0 0.0
    %1452 = vmatmul.mubr.f32.gmra.mrb[0].mxu0 %v1385
    %v1453 = vpop.f32.mrb[0].mxu0
    %v1454 = vadd.f32 %v1381, %v1453
    %v1455 = vpop.f32.mrb[0].mxu0
    %1456 = vdwg.mxu0
    %1457 = vrot.lane.b32.xlu0 %v1297, 127
    %v1458 = vpop.permute.xlu0 %1457
    %vm1460 = vcmask 121856
    %v1461 = vsel %vm1460, %v1458, 0.0
    %vm1462 = vcmp.lt.s32.totalorder %v13, 15
    %v1463 = vsel %vm1462, 1, 0
    %vm1464 = vcmp.eq.s32.totalorder %v1463, 1
    %v1465 = vsel %vm1464, %v1461, 0.0
    %v1466 = vld [vmem:[%s1 + $0xc8] sm:$0xff]
    %v1468 = vsel %vm34, %v1466, 0
    %1470 = vmatprep.subr.mxu0 0.0
    %1471 = vmatpush1.msra.mxu0 %v1465
    %1472 = vmatprep.subr.mxu0 0.0
    %1473 = vmatpush1.msra.mxu0 0.0
    %1474 = vmatprep.subr.mxu0 0.0
    %1475 = vmatpush1.msra.mxu0 0.0
    %1476 = vmatprep.subr.mxu0 0.0
    %1477 = vmatpush1.msra.mxu0 0.0
    %1478 = vmatprep.subr.mxu0 0.0
    %1479 = vmatpush1.msra.mxu0 0.0
    %1480 = vmatprep.subr.mxu0 0.0
    %1481 = vmatpush1.msra.mxu0 0.0
    %1482 = vmatprep.subr.mxu0 0.0
    %1483 = vmatpush1.msra.mxu0 0.0
    %1484 = vmatprep.subr.mxu0 0.0
    %1485 = vmatpush1.msra.mxu0 0.0
    %1486 = vmatprep.subr.mxu0 0.0
    %1487 = vmatpush1.msra.mxu0 0.0
    %1488 = vmatprep.subr.mxu0 0.0
    %1489 = vmatpush1.msra.mxu0 0.0
    %1490 = vmatprep.subr.mxu0 0.0
    %1491 = vmatpush1.msra.mxu0 0.0
    %1492 = vmatprep.subr.mxu0 0.0
    %1493 = vmatpush1.msra.mxu0 0.0
    %1494 = vmatprep.subr.mxu0 0.0
    %1495 = vmatpush1.msra.mxu0 0.0
    %1496 = vmatprep.subr.mxu0 0.0
    %1497 = vmatpush1.msra.mxu0 0.0
    %1498 = vmatprep.subr.mxu0 0.0
    %1499 = vmatpush1.msra.mxu0 0.0
    %1500 = vmatprep.subr.mxu0 0.0
    %1501 = vmatpush1.msra.mxu0 0.0
    %1502 = vmatprep.subr.mxu0 0.0
    %1503 = vmatpush1.msra.mxu0 0.0
    %1504 = vmatprep.subr.mxu0 0.0
    %1505 = vmatpush1.msra.mxu0 0.0
    %1506 = vmatprep.subr.mxu0 0.0
    %1507 = vmatpush1.msra.mxu0 0.0
    %1508 = vmatprep.subr.mxu0 0.0
    %1509 = vmatpush1.msra.mxu0 0.0
    %1510 = vmatprep.subr.mxu0 0.0
    %1511 = vmatpush1.msra.mxu0 0.0
    %1512 = vmatprep.subr.mxu0 0.0
    %1513 = vmatpush1.msra.mxu0 0.0
    %1514 = vmatprep.subr.mxu0 0.0
    %1515 = vmatpush1.msra.mxu0 0.0
    %1516 = vmatprep.subr.mxu0 0.0
    %1517 = vmatpush1.msra.mxu0 0.0
    %1518 = vmatprep.subr.mxu0 0.0
    %1519 = vmatpush1.msra.mxu0 0.0
    %1520 = vmatprep.subr.mxu0 0.0
    %1521 = vmatpush1.msra.mxu0 0.0
    %1522 = vmatprep.subr.mxu0 0.0
    %1523 = vmatpush1.msra.mxu0 0.0
    %1524 = vmatprep.subr.mxu0 0.0
    %1525 = vmatpush1.msra.mxu0 0.0
    %1526 = vmatprep.subr.mxu0 0.0
    %1527 = vmatpush1.msra.mxu0 0.0
    %1528 = vmatprep.subr.mxu0 0.0
    %1529 = vmatpush1.msra.mxu0 0.0
    %1530 = vmatprep.subr.mxu0 0.0
    %1531 = vmatpush1.msra.mxu0 0.0
    %1532 = vmatprep.subr.mxu0 0.0
    %1533 = vmatpush1.msra.mxu0 0.0
    %1534 = vmatprep.mubr.f32.mxu0 0.0
    %1535 = vmatmul.mubr.f32.gmra.mrb[0].mxu0 %v1468
    %v1536 = vpop.f32.mrb[0].mxu0
    %v1537 = vadd.f32 0.0, %v1536
    %v1538 = vpop.f32.mrb[0].mxu0
    %1539 = vdwg.mxu0
    %v1540 = vadd.f32 %v1454, %v1537
    %v1541 = vld [vmem:[%s1 + $0xd0] sm:$0xff]
    %1543 = vset.pattern.permute.xlu0 0
    %1544 = vperm.xlu0 %1543, %v1541
    %v1545 = vpop.permute.xlu0 %1544
    %v1547 = vadd.f32 %v1540, %v1545
    %v1548 = vmax.f32 %v1547, 0.0
    %v1549 = vld [vmem:[%s1 + $0xd8] sm:$0xff]
    %v1550 = vld [vmem:[%s1 + $0xe0] sm:$0xff]
    %1552 = vset.pattern.permute.xlu0 0
    %1553 = vperm.xlu0 %1552, %v1550
    %v1554 = vpop.permute.xlu0 %1553
    %v1557 = vsel %vm34, %v1549, 0
    %1559 = vmatprep.subr.mxu0 0.0
    %1560 = vmatpush1.msra.mxu0 %v1548
    %1561 = vmatprep.subr.mxu0 0.0
    %1562 = vmatpush1.msra.mxu0 0.0
    %1563 = vmatprep.subr.mxu0 0.0
    %1564 = vmatpush1.msra.mxu0 0.0
    %1565 = vmatprep.subr.mxu0 0.0
    %1566 = vmatpush1.msra.mxu0 0.0
    %1567 = vmatprep.subr.mxu0 0.0
    %1568 = vmatpush1.msra.mxu0 0.0
    %1569 = vmatprep.subr.mxu0 0.0
    %1570 = vmatpush1.msra.mxu0 0.0
    %1571 = vmatprep.subr.mxu0 0.0
    %1572 = vmatpush1.msra.mxu0 0.0
    %1573 = vmatprep.subr.mxu0 0.0
    %1574 = vmatpush1.msra.mxu0 0.0
    %1575 = vmatprep.subr.mxu0 0.0
    %1576 = vmatpush1.msra.mxu0 0.0
    %1577 = vmatprep.subr.mxu0 0.0
    %1578 = vmatpush1.msra.mxu0 0.0
    %1579 = vmatprep.subr.mxu0 0.0
    %1580 = vmatpush1.msra.mxu0 0.0
    %1581 = vmatprep.subr.mxu0 0.0
    %1582 = vmatpush1.msra.mxu0 0.0
    %1583 = vmatprep.subr.mxu0 0.0
    %1584 = vmatpush1.msra.mxu0 0.0
    %1585 = vmatprep.subr.mxu0 0.0
    %1586 = vmatpush1.msra.mxu0 0.0
    %1587 = vmatprep.subr.mxu0 0.0
    %1588 = vmatpush1.msra.mxu0 0.0
    %1589 = vmatprep.subr.mxu0 0.0
    %1590 = vmatpush1.msra.mxu0 0.0
    %1591 = vmatprep.subr.mxu0 0.0
    %1592 = vmatpush1.msra.mxu0 0.0
    %1593 = vmatprep.subr.mxu0 0.0
    %1594 = vmatpush1.msra.mxu0 0.0
    %1595 = vmatprep.subr.mxu0 0.0
    %1596 = vmatpush1.msra.mxu0 0.0
    %1597 = vmatprep.subr.mxu0 0.0
    %1598 = vmatpush1.msra.mxu0 0.0
    %1599 = vmatprep.subr.mxu0 0.0
    %1600 = vmatpush1.msra.mxu0 0.0
    %1601 = vmatprep.subr.mxu0 0.0
    %1602 = vmatpush1.msra.mxu0 0.0
    %1603 = vmatprep.subr.mxu0 0.0
    %1604 = vmatpush1.msra.mxu0 0.0
    %1605 = vmatprep.subr.mxu0 0.0
    %1606 = vmatpush1.msra.mxu0 0.0
    %1607 = vmatprep.subr.mxu0 0.0
    %1608 = vmatpush1.msra.mxu0 0.0
    %1609 = vmatprep.subr.mxu0 0.0
    %1610 = vmatpush1.msra.mxu0 0.0
    %1611 = vmatprep.subr.mxu0 0.0
    %1612 = vmatpush1.msra.mxu0 0.0
    %1613 = vmatprep.subr.mxu0 0.0
    %1614 = vmatpush1.msra.mxu0 0.0
    %1615 = vmatprep.subr.mxu0 0.0
    %1616 = vmatpush1.msra.mxu0 0.0
    %1617 = vmatprep.subr.mxu0 0.0
    %1618 = vmatpush1.msra.mxu0 0.0
    %1619 = vmatprep.subr.mxu0 0.0
    %1620 = vmatpush1.msra.mxu0 0.0
    %1621 = vmatprep.subr.mxu0 0.0
    %1622 = vmatpush1.msra.mxu0 0.0
    %1623 = vmatprep.mubr.f32.mxu0 0.0
    %1624 = vmatmul.mubr.f32.gmra.mrb[0].mxu0 %v1557
    %v1625 = vpop.f32.mrb[0].mxu0
    %v1626 = vadd.f32 %v1554, %v1625
    %v1627 = vpop.f32.mrb[0].mxu0
    %1628 = vdwg.mxu0
    %v1629 = vadd.f32 %v1297, %v1626
    %1631 = vrot.lane.b32.xlu0 %v1629, 2
    %v1632 = vpop.permute.xlu0 %1631
    %v1634 = vsel %vm443, 0.0, %v1632
    %vm1635 = vcmp.ge.s32.totalorder %v13, 2
    %v1636 = vsel %vm1635, 1, 0
    %vm1637 = vcmp.eq.s32.totalorder %v1636, 1
    %v1638 = vsel %vm1637, %v1634, 0.0
    %v1639 = vld [vmem:[%s1 + $0xe8] sm:$0xff]
    %v1640 = vld [vmem:[%s1 + $0xf0] sm:$0xff]
    %v1642 = vsel %vm34, %v1640, 0
    %1644 = vmatprep.subr.mxu0 0.0
    %1645 = vmatpush1.msra.mxu0 %v1629
    %1646 = vmatprep.subr.mxu0 0.0
    %1647 = vmatpush1.msra.mxu0 0.0
    %1648 = vmatprep.subr.mxu0 0.0
    %1649 = vmatpush1.msra.mxu0 0.0
    %1650 = vmatprep.subr.mxu0 0.0
    %1651 = vmatpush1.msra.mxu0 0.0
    %1652 = vmatprep.subr.mxu0 0.0
    %1653 = vmatpush1.msra.mxu0 0.0
    %1654 = vmatprep.subr.mxu0 0.0
    %1655 = vmatpush1.msra.mxu0 0.0
    %1656 = vmatprep.subr.mxu0 0.0
    %1657 = vmatpush1.msra.mxu0 0.0
    %1658 = vmatprep.subr.mxu0 0.0
    %1659 = vmatpush1.msra.mxu0 0.0
    %1660 = vmatprep.subr.mxu0 0.0
    %1661 = vmatpush1.msra.mxu0 0.0
    %1662 = vmatprep.subr.mxu0 0.0
    %1663 = vmatpush1.msra.mxu0 0.0
    %1664 = vmatprep.subr.mxu0 0.0
    %1665 = vmatpush1.msra.mxu0 0.0
    %1666 = vmatprep.subr.mxu0 0.0
    %1667 = vmatpush1.msra.mxu0 0.0
    %1668 = vmatprep.subr.mxu0 0.0
    %1669 = vmatpush1.msra.mxu0 0.0
    %1670 = vmatprep.subr.mxu0 0.0
    %1671 = vmatpush1.msra.mxu0 0.0
    %1672 = vmatprep.subr.mxu0 0.0
    %1673 = vmatpush1.msra.mxu0 0.0
    %1674 = vmatprep.subr.mxu0 0.0
    %1675 = vmatpush1.msra.mxu0 0.0
    %1676 = vmatprep.subr.mxu0 0.0
    %1677 = vmatpush1.msra.mxu0 0.0
    %1678 = vmatprep.subr.mxu0 0.0
    %1679 = vmatpush1.msra.mxu0 0.0
    %1680 = vmatprep.subr.mxu0 0.0
    %1681 = vmatpush1.msra.mxu0 0.0
    %1682 = vmatprep.subr.mxu0 0.0
    %1683 = vmatpush1.msra.mxu0 0.0
    %1684 = vmatprep.subr.mxu0 0.0
    %1685 = vmatpush1.msra.mxu0 0.0
    %1686 = vmatprep.subr.mxu0 0.0
    %1687 = vmatpush1.msra.mxu0 0.0
    %1688 = vmatprep.subr.mxu0 0.0
    %1689 = vmatpush1.msra.mxu0 0.0
    %1690 = vmatprep.subr.mxu0 0.0
    %1691 = vmatpush1.msra.mxu0 0.0
    %1692 = vmatprep.subr.mxu0 0.0
    %1693 = vmatpush1.msra.mxu0 0.0
    %1694 = vmatprep.subr.mxu0 0.0
    %1695 = vmatpush1.msra.mxu0 0.0
    %1696 = vmatprep.subr.mxu0 0.0
    %1697 = vmatpush1.msra.mxu0 0.0
    %1698 = vmatprep.subr.mxu0 0.0
    %1699 = vmatpush1.msra.mxu0 0.0
    %1700 = vmatprep.subr.mxu0 0.0
    %1701 = vmatpush1.msra.mxu0 0.0
    %1702 = vmatprep.subr.mxu0 0.0
    %1703 = vmatpush1.msra.mxu0 0.0
    %1704 = vmatprep.subr.mxu0 0.0
    %1705 = vmatpush1.msra.mxu0 0.0
    %1706 = vmatprep.subr.mxu0 0.0
    %1707 = vmatpush1.msra.mxu0 0.0
    %1708 = vmatprep.mubr.f32.mxu0 0.0
    %1709 = vmatmul.mubr.f32.gmra.mrb[0].mxu0 %v1642
    %v1710 = vpop.f32.mrb[0].mxu0
    %v1711 = vadd.f32 0.0, %v1710
    %v1712 = vpop.f32.mrb[0].mxu0
    %1713 = vdwg.mxu0
    %v1715 = vsel %vm34, %v1639, 0
    %1717 = vmatprep.subr.mxu0 0.0
    %1718 = vmatpush1.msra.mxu0 %v1638
    %1719 = vmatprep.subr.mxu0 0.0
    %1720 = vmatpush1.msra.mxu0 0.0
    %1721 = vmatprep.subr.mxu0 0.0
    %1722 = vmatpush1.msra.mxu0 0.0
    %1723 = vmatprep.subr.mxu0 0.0
    %1724 = vmatpush1.msra.mxu0 0.0
    %1725 = vmatprep.subr.mxu0 0.0
    %1726 = vmatpush1.msra.mxu0 0.0
    %1727 = vmatprep.subr.mxu0 0.0
    %1728 = vmatpush1.msra.mxu0 0.0
    %1729 = vmatprep.subr.mxu0 0.0
    %1730 = vmatpush1.msra.mxu0 0.0
    %1731 = vmatprep.subr.mxu0 0.0
    %1732 = vmatpush1.msra.mxu0 0.0
    %1733 = vmatprep.subr.mxu0 0.0
    %1734 = vmatpush1.msra.mxu0 0.0
    %1735 = vmatprep.subr.mxu0 0.0
    %1736 = vmatpush1.msra.mxu0 0.0
    %1737 = vmatprep.subr.mxu0 0.0
    %1738 = vmatpush1.msra.mxu0 0.0
    %1739 = vmatprep.subr.mxu0 0.0
    %1740 = vmatpush1.msra.mxu0 0.0
    %1741 = vmatprep.subr.mxu0 0.0
    %1742 = vmatpush1.msra.mxu0 0.0
    %1743 = vmatprep.subr.mxu0 0.0
    %1744 = vmatpush1.msra.mxu0 0.0
    %1745 = vmatprep.subr.mxu0 0.0
    %1746 = vmatpush1.msra.mxu0 0.0
    %1747 = vmatprep.subr.mxu0 0.0
    %1748 = vmatpush1.msra.mxu0 0.0
    %1749 = vmatprep.subr.mxu0 0.0
    %1750 = vmatpush1.msra.mxu0 0.0
    %1751 = vmatprep.subr.mxu0 0.0
    %1752 = vmatpush1.msra.mxu0 0.0
    %1753 = vmatprep.subr.mxu0 0.0
    %1754 = vmatpush1.msra.mxu0 0.0
    %1755 = vmatprep.subr.mxu0 0.0
    %1756 = vmatpush1.msra.mxu0 0.0
    %1757 = vmatprep.subr.mxu0 0.0
    %1758 = vmatpush1.msra.mxu0 0.0
    %1759 = vmatprep.subr.mxu0 0.0
    %1760 = vmatpush1.msra.mxu0 0.0
    %1761 = vmatprep.subr.mxu0 0.0
    %1762 = vmatpush1.msra.mxu0 0.0
    %1763 = vmatprep.subr.mxu0 0.0
    %1764 = vmatpush1.msra.mxu0 0.0
    %1765 = vmatprep.subr.mxu0 0.0
    %1766 = vmatpush1.msra.mxu0 0.0
    %1767 = vmatprep.subr.mxu0 0.0
    %1768 = vmatpush1.msra.mxu0 0.0
    %1769 = vmatprep.subr.mxu0 0.0
    %1770 = vmatpush1.msra.mxu0 0.0
    %1771 = vmatprep.subr.mxu0 0.0
    %1772 = vmatpush1.msra.mxu0 0.0
    %1773 = vmatprep.subr.mxu0 0.0
    %1774 = vmatpush1.msra.mxu0 0.0
    %1775 = vmatprep.subr.mxu0 0.0
    %1776 = vmatpush1.msra.mxu0 0.0
    %1777 = vmatprep.subr.mxu0 0.0
    %1778 = vmatpush1.msra.mxu0 0.0
    %1779 = vmatprep.subr.mxu0 0.0
    %1780 = vmatpush1.msra.mxu0 0.0
    %1781 = vmatprep.mubr.f32.mxu0 0.0
    %1782 = vmatmul.mubr.f32.gmra.mrb[0].mxu0 %v1715
    %v1783 = vpop.f32.mrb[0].mxu0
    %v1784 = vadd.f32 %v1711, %v1783
    %v1785 = vpop.f32.mrb[0].mxu0
    %1786 = vdwg.mxu0
    %1787 = vrot.lane.b32.xlu0 %v1629, 126
    %v1788 = vpop.permute.xlu0 %1787
    %vm1790 = vcmask 113664
    %v1791 = vsel %vm1790, %v1788, 0.0
    %vm1792 = vcmp.lt.s32.totalorder %v13, 14
    %v1793 = vsel %vm1792, 1, 0
    %vm1794 = vcmp.eq.s32.totalorder %v1793, 1
    %v1795 = vsel %vm1794, %v1791, 0.0
    %v1796 = vld [vmem:[%s1 + $0xf8] sm:$0xff]
    %v1798 = vsel %vm34, %v1796, 0
    %1800 = vmatprep.subr.mxu0 0.0
    %1801 = vmatpush1.msra.mxu0 %v1795
    %1802 = vmatprep.subr.mxu0 0.0
    %1803 = vmatpush1.msra.mxu0 0.0
    %1804 = vmatprep.subr.mxu0 0.0
    %1805 = vmatpush1.msra.mxu0 0.0
    %1806 = vmatprep.subr.mxu0 0.0
    %1807 = vmatpush1.msra.mxu0 0.0
    %1808 = vmatprep.subr.mxu0 0.0
    %1809 = vmatpush1.msra.mxu0 0.0
    %1810 = vmatprep.subr.mxu0 0.0
    %1811 = vmatpush1.msra.mxu0 0.0
    %1812 = vmatprep.subr.mxu0 0.0
    %1813 = vmatpush1.msra.mxu0 0.0
    %1814 = vmatprep.subr.mxu0 0.0
    %1815 = vmatpush1.msra.mxu0 0.0
    %1816 = vmatprep.subr.mxu0 0.0
    %1817 = vmatpush1.msra.mxu0 0.0
    %1818 = vmatprep.subr.mxu0 0.0
    %1819 = vmatpush1.msra.mxu0 0.0
    %1820 = vmatprep.subr.mxu0 0.0
    %1821 = vmatpush1.msra.mxu0 0.0
    %1822 = vmatprep.subr.mxu0 0.0
    %1823 = vmatpush1.msra.mxu0 0.0
    %1824 = vmatprep.subr.mxu0 0.0
    %1825 = vmatpush1.msra.mxu0 0.0
    %1826 = vmatprep.subr.mxu0 0.0
    %1827 = vmatpush1.msra.mxu0 0.0
    %1828 = vmatprep.subr.mxu0 0.0
    %1829 = vmatpush1.msra.mxu0 0.0
    %1830 = vmatprep.subr.mxu0 0.0
    %1831 = vmatpush1.msra.mxu0 0.0
    %1832 = vmatprep.subr.mxu0 0.0
    %1833 = vmatpush1.msra.mxu0 0.0
    %1834 = vmatprep.subr.mxu0 0.0
    %1835 = vmatpush1.msra.mxu0 0.0
    %1836 = vmatprep.subr.mxu0 0.0
    %1837 = vmatpush1.msra.mxu0 0.0
    %1838 = vmatprep.subr.mxu0 0.0
    %1839 = vmatpush1.msra.mxu0 0.0
    %1840 = vmatprep.subr.mxu0 0.0
    %1841 = vmatpush1.msra.mxu0 0.0
    %1842 = vmatprep.subr.mxu0 0.0
    %1843 = vmatpush1.msra.mxu0 0.0
    %1844 = vmatprep.subr.mxu0 0.0
    %1845 = vmatpush1.msra.mxu0 0.0
    %1846 = vmatprep.subr.mxu0 0.0
    %1847 = vmatpush1.msra.mxu0 0.0
    %1848 = vmatprep.subr.mxu0 0.0
    %1849 = vmatpush1.msra.mxu0 0.0
    %1850 = vmatprep.subr.mxu0 0.0
    %1851 = vmatpush1.msra.mxu0 0.0
    %1852 = vmatprep.subr.mxu0 0.0
    %1853 = vmatpush1.msra.mxu0 0.0
    %1854 = vmatprep.subr.mxu0 0.0
    %1855 = vmatpush1.msra.mxu0 0.0
    %1856 = vmatprep.subr.mxu0 0.0
    %1857 = vmatpush1.msra.mxu0 0.0
    %1858 = vmatprep.subr.mxu0 0.0
    %1859 = vmatpush1.msra.mxu0 0.0
    %1860 = vmatprep.subr.mxu0 0.0
    %1861 = vmatpush1.msra.mxu0 0.0
    %1862 = vmatprep.subr.mxu0 0.0
    %1863 = vmatpush1.msra.mxu0 0.0
    %1864 = vmatprep.mubr.f32.mxu0 0.0
    %1865 = vmatmul.mubr.f32.gmra.mrb[0].mxu0 %v1798
    %v1866 = vpop.f32.mrb[0].mxu0
    %v1867 = vadd.f32 0.0, %v1866
    %v1868 = vpop.f32.mrb[0].mxu0
    %1869 = vdwg.mxu0
    %v1870 = vadd.f32 %v1784, %v1867
    %v1871 = vld [vmem:[%s1 + $0x100] sm:$0xff]
    %1873 = vset.pattern.permute.xlu0 0
    %1874 = vperm.xlu0 %1873, %v1871
    %v1875 = vpop.permute.xlu0 %1874
    %v1877 = vadd.f32 %v1870, %v1875
    %v1878 = vmax.f32 %v1877, 0.0
    %v1879 = vld [vmem:[%s1 + $0x108] sm:$0xff]
    %v1880 = vld [vmem:[%s1 + $0x110] sm:$0xff]
    %1882 = vset.pattern.permute.xlu0 0
    %1883 = vperm.xlu0 %1882, %v1880
    %v1884 = vpop.permute.xlu0 %1883
    %v1887 = vsel %vm34, %v1879, 0
    %1889 = vmatprep.subr.mxu0 0.0
    %1890 = vmatpush1.msra.mxu0 %v1878
    %1891 = vmatprep.subr.mxu0 0.0
    %1892 = vmatpush1.msra.mxu0 0.0
    %1893 = vmatprep.subr.mxu0 0.0
    %1894 = vmatpush1.msra.mxu0 0.0
    %1895 = vmatprep.subr.mxu0 0.0
    %1896 = vmatpush1.msra.mxu0 0.0
    %1897 = vmatprep.subr.mxu0 0.0
    %1898 = vmatpush1.msra.mxu0 0.0
    %1899 = vmatprep.subr.mxu0 0.0
    %1900 = vmatpush1.msra.mxu0 0.0
    %1901 = vmatprep.subr.mxu0 0.0
    %1902 = vmatpush1.msra.mxu0 0.0
    %1903 = vmatprep.subr.mxu0 0.0
    %1904 = vmatpush1.msra.mxu0 0.0
    %1905 = vmatprep.subr.mxu0 0.0
    %1906 = vmatpush1.msra.mxu0 0.0
    %1907 = vmatprep.subr.mxu0 0.0
    %1908 = vmatpush1.msra.mxu0 0.0
    %1909 = vmatprep.subr.mxu0 0.0
    %1910 = vmatpush1.msra.mxu0 0.0
    %1911 = vmatprep.subr.mxu0 0.0
    %1912 = vmatpush1.msra.mxu0 0.0
    %1913 = vmatprep.subr.mxu0 0.0
    %1914 = vmatpush1.msra.mxu0 0.0
    %1915 = vmatprep.subr.mxu0 0.0
    %1916 = vmatpush1.msra.mxu0 0.0
    %1917 = vmatprep.subr.mxu0 0.0
    %1918 = vmatpush1.msra.mxu0 0.0
    %1919 = vmatprep.subr.mxu0 0.0
    %1920 = vmatpush1.msra.mxu0 0.0
    %1921 = vmatprep.subr.mxu0 0.0
    %1922 = vmatpush1.msra.mxu0 0.0
    %1923 = vmatprep.subr.mxu0 0.0
    %1924 = vmatpush1.msra.mxu0 0.0
    %1925 = vmatprep.subr.mxu0 0.0
    %1926 = vmatpush1.msra.mxu0 0.0
    %1927 = vmatprep.subr.mxu0 0.0
    %1928 = vmatpush1.msra.mxu0 0.0
    %1929 = vmatprep.subr.mxu0 0.0
    %1930 = vmatpush1.msra.mxu0 0.0
    %1931 = vmatprep.subr.mxu0 0.0
    %1932 = vmatpush1.msra.mxu0 0.0
    %1933 = vmatprep.subr.mxu0 0.0
    %1934 = vmatpush1.msra.mxu0 0.0
    %1935 = vmatprep.subr.mxu0 0.0
    %1936 = vmatpush1.msra.mxu0 0.0
    %1937 = vmatprep.subr.mxu0 0.0
    %1938 = vmatpush1.msra.mxu0 0.0
    %1939 = vmatprep.subr.mxu0 0.0
    %1940 = vmatpush1.msra.mxu0 0.0
    %1941 = vmatprep.subr.mxu0 0.0
    %1942 = vmatpush1.msra.mxu0 0.0
    %1943 = vmatprep.subr.mxu0 0.0
    %1944 = vmatpush1.msra.mxu0 0.0
    %1945 = vmatprep.subr.mxu0 0.0
    %1946 = vmatpush1.msra.mxu0 0.0
    %1947 = vmatprep.subr.mxu0 0.0
    %1948 = vmatpush1.msra.mxu0 0.0
    %1949 = vmatprep.subr.mxu0 0.0
    %1950 = vmatpush1.msra.mxu0 0.0
    %1951 = vmatprep.subr.mxu0 0.0
    %1952 = vmatpush1.msra.mxu0 0.0
    %1953 = vmatprep.mubr.f32.mxu0 0.0
    %1954 = vmatmul.mubr.f32.gmra.mrb[0].mxu0 %v1887
    %v1955 = vpop.f32.mrb[0].mxu0
    %v1956 = vadd.f32 %v1884, %v1955
    %v1957 = vpop.f32.mrb[0].mxu0
    %1958 = vdwg.mxu0
    %v1959 = vadd.f32 %v1629, %v1956
    %v1960 = vld [vmem:[%s1 + $0x118] sm:$0xf]
    %v1961 = vld [vmem:[%s1 + $0x11c] sm:$0xf]
    %1963 = vset.pattern.permute.xlu0 0
    %1964 = vperm.xlu0 %1963, %v1961
    %v1965 = vpop.permute.xlu0 %1964
    %v1968 = vsel %vm34, %v1960, 0
    %1970 = vmatprep.subr.mxu0 0.0
    %1971 = vmatpush1.msra.mxu0 %v1959
    %1972 = vmatprep.subr.mxu0 0.0
    %1973 = vmatpush1.msra.mxu0 0.0
    %1974 = vmatprep.subr.mxu0 0.0
    %1975 = vmatpush1.msra.mxu0 0.0
    %1976 = vmatprep.subr.mxu0 0.0
    %1977 = vmatpush1.msra.mxu0 0.0
    %1978 = vmatprep.subr.mxu0 0.0
    %1979 = vmatpush1.msra.mxu0 0.0
    %1980 = vmatprep.subr.mxu0 0.0
    %1981 = vmatpush1.msra.mxu0 0.0
    %1982 = vmatprep.subr.mxu0 0.0
    %1983 = vmatpush1.msra.mxu0 0.0
    %1984 = vmatprep.subr.mxu0 0.0
    %1985 = vmatpush1.msra.mxu0 0.0
    %1986 = vmatprep.subr.mxu0 0.0
    %1987 = vmatpush1.msra.mxu0 0.0
    %1988 = vmatprep.subr.mxu0 0.0
    %1989 = vmatpush1.msra.mxu0 0.0
    %1990 = vmatprep.subr.mxu0 0.0
    %1991 = vmatpush1.msra.mxu0 0.0
    %1992 = vmatprep.subr.mxu0 0.0
    %1993 = vmatpush1.msra.mxu0 0.0
    %1994 = vmatprep.subr.mxu0 0.0
    %1995 = vmatpush1.msra.mxu0 0.0
    %1996 = vmatprep.subr.mxu0 0.0
    %1997 = vmatpush1.msra.mxu0 0.0
    %1998 = vmatprep.subr.mxu0 0.0
    %1999 = vmatpush1.msra.mxu0 0.0
    %2000 = vmatprep.subr.mxu0 0.0
    %2001 = vmatpush1.msra.mxu0 0.0
    %2002 = vmatprep.subr.mxu0 0.0
    %2003 = vmatpush1.msra.mxu0 0.0
    %2004 = vmatprep.subr.mxu0 0.0
    %2005 = vmatpush1.msra.mxu0 0.0
    %2006 = vmatprep.subr.mxu0 0.0
    %2007 = vmatpush1.msra.mxu0 0.0
    %2008 = vmatprep.subr.mxu0 0.0
    %2009 = vmatpush1.msra.mxu0 0.0
    %2010 = vmatprep.subr.mxu0 0.0
    %2011 = vmatpush1.msra.mxu0 0.0
    %2012 = vmatprep.subr.mxu0 0.0
    %2013 = vmatpush1.msra.mxu0 0.0
    %2014 = vmatprep.subr.mxu0 0.0
    %2015 = vmatpush1.msra.mxu0 0.0
    %2016 = vmatprep.subr.mxu0 0.0
    %2017 = vmatpush1.msra.mxu0 0.0
    %2018 = vmatprep.subr.mxu0 0.0
    %2019 = vmatpush1.msra.mxu0 0.0
    %2020 = vmatprep.subr.mxu0 0.0
    %2021 = vmatpush1.msra.mxu0 0.0
    %2022 = vmatprep.subr.mxu0 0.0
    %2023 = vmatpush1.msra.mxu0 0.0
    %2024 = vmatprep.subr.mxu0 0.0
    %2025 = vmatpush1.msra.mxu0 0.0
    %2026 = vmatprep.subr.mxu0 0.0
    %2027 = vmatpush1.msra.mxu0 0.0
    %2028 = vmatprep.subr.mxu0 0.0
    %2029 = vmatpush1.msra.mxu0 0.0
    %2030 = vmatprep.subr.mxu0 0.0
    %2031 = vmatpush1.msra.mxu0 0.0
    %2032 = vmatprep.subr.mxu0 0.0
    %2033 = vmatpush1.msra.mxu0 0.0
    %2034 = vmatprep.mubr.f32.mxu0 0.0
    %2035 = vmatmul.mubr.f32.gmra.mrb[0].mxu0 %v1968
    %v2036 = vpop.f32.mrb[0].mxu0
    %v2037 = vadd.f32 %v1965, %v2036
    %v2038 = vpop.f32.mrb[0].mxu0
    %2039 = vdwg.mxu0
    %s2040 = scalar_lea.vmem [#allocation2], 4
    %2041 = vst.msk [vmem:[%s2040] sm:$0xf] %vm1195, %v2037
    // Predicated region
    $region10: #{tpu_custom_call.1} parent=1 // pred_check
      _
    $region11: #{tpu_custom_call.1} parent=1 // pred_check_branch
      %2043 = sbr.rel (0) target = $region13
    $region12: #{tpu_custom_call.1} parent=1 // pred_region
      %s2045 = ssub.s32 128, 128
      %2046 = vsyncadd [#allocation3], %s2045
      %s2047 = sshll.u32 [#allocation2], 4
      %s2048 = int_to_ptr.vmem [resolvable:$true] %s2047
      %2053 = dma.vmem_to_hbm [thread:$0]  %s2048, 128, %s2, [#allocation3], 64, 64, 4
    $region13: #{tpu_custom_call.1} parent=1 // pred_fallthru
      _
    // Predicated region
    $region14: #{tpu_custom_call.1} parent=1 // pred_check
      _
    $region15: #{tpu_custom_call.1} parent=1 // pred_check_branch
      %2055 = sbr.rel (0) target = $region17
    $region16: #{tpu_custom_call.1} parent=1 // pred_region
      %2056 = dma.done [#allocation3], 128
    $region17: #{tpu_custom_call.1} parent=1 // pred_fallthru
      _
    %2057 = vsyncpa [#allocation3], 1

</llo_original>
